<compile_context>
chip_gen: v7x
topology: tpu7x:2x2x1
jax: 0.10.0
libtpu: 0.0.40
codegen_flags: <defaults>
</compile_context>

<pallas_src>
import functools

import jax
import jax.numpy as jnp
from jax.experimental import pallas as pl
from jax.experimental.pallas import tpu as pltpu


def _round_up(x, m):
    return ((x + m - 1) // m) * m


# ----------------------------------------------------------------------------
# Fused kernel: 4x HyperSage + hyperedge attention + output FC.
# One grid step = tm samples (rows), everything lane-dense:
#   h_all  = relu(X_t @ M + b)              (tm, K*N*Ch)   one MXU matmul
#   e      = leakyrelu(h_all @ V_blk + c)   (tm, K*N)      one MXU matmul
#   scores = softmax_k(e)                   (tm, K*N)      VPU/EUP only
#   s_exp  = scores @ E_blk                 (tm, K*N*Ch)   one MXU matmul
#   agg    = relu(sum_k s_exp_k * h_k)      (tm, N*Ch)     VPU
#   out    = relu(agg @ Wfc_blk + b_fc)     (tm, N*Cout)   one MXU matmul
# ----------------------------------------------------------------------------
def fused_dhg_kernel(x_ref, m_ref, b_ref, v_ref, eexp_ref, wfc_ref, bfc_ref,
                     c_ref, o_ref, s_ref, *, n_nodes, n_edges, slope):
    f32 = jnp.float32
    kn_ch = m_ref.shape[1]              # K * N * Ch
    n_ch = kn_ch // n_edges             # N * Ch

    # -- all K hyperedge convolutions in ONE lane-dense MXU matmul -----------
    # h_all[m, k*N*Ch + i*Ch + d] =
    #     relu(sum_{cin,j} X[m,j,cin] * G_k[i,j] * W_k[cin,d] + b_k[d])
    h_all = jnp.dot(x_ref[...], m_ref[...], preferred_element_type=f32)
    h_all = jnp.maximum(h_all + b_ref[...], 0.0)                 # (tm, K*N*Ch)

    # -- attention logits: e[m, k*N + i] = h_k[m,i,:] . v_att + c -------------
    e_all = jnp.dot(h_all, v_ref[...], preferred_element_type=f32) + c_ref[0, 0]
    e_all = jnp.where(e_all > 0, e_all, slope * e_all)           # LeakyReLU(0.01)

    # -- softmax over the K hyperedges (pure VPU/EUP on tiny lane slices) -----
    e_k = [e_all[:, k * n_nodes:(k + 1) * n_nodes] for k in range(n_edges)]
    e_max = e_k[0]
    for k in range(1, n_edges):
        e_max = jnp.maximum(e_max, e_k[k])
    p_k = [jnp.exp(ek - e_max) for ek in e_k]
    denom = p_k[0]
    for k in range(1, n_edges):
        denom = denom + p_k[k]
    inv = pl.reciprocal(denom, approx=False)      # exact: scores sum to 1
    scores = jnp.concatenate([pk * inv for pk in p_k], axis=-1)  # (tm, K*N)

    # -- expand scores to the (k, node, ch) lane layout and aggregate ---------
    s_exp = jnp.dot(scores, eexp_ref[...], preferred_element_type=f32)
    w = s_exp * h_all                                            # (tm, K*N*Ch)
    agg = w[:, 0:n_ch]
    for k in range(1, n_edges):
        agg = agg + w[:, k * n_ch:(k + 1) * n_ch]
    agg = jnp.maximum(agg, 0.0)                                  # (tm, N*Ch)

    # -- output FC (block-diagonal W_fc keeps the (node, ch) lane layout) -----
    out = jnp.dot(agg.astype(wfc_ref.dtype), wfc_ref[...],
                  preferred_element_type=f32) + bfc_ref[...]
    o_ref[...] = jnp.maximum(out, 0.0).astype(o_ref.dtype)       # (tm, N*Cout)
    s_ref[...] = scores.astype(s_ref.dtype)                      # (tm, K*N)


# ----------------------------------------------------------------------------
# Parameters
# ----------------------------------------------------------------------------
def xavier(key, shape, gain=1.0):
    fan_in, fan_out = shape[-2], shape[-1]
    bound = gain * (6.0 / (fan_in + fan_out)) ** 0.5
    return jax.random.uniform(key, shape, jnp.float32, -bound, bound)


def init_dhg_params(key, dim_in, dim_hidden, dim_out, G_list):
    ah = max(dim_hidden // 4, 4)
    ks = jax.random.split(key, 8)
    # Stack order must match torch forward: [hgc_c, hgc_s, hgc_poi_c, hgc_poi_s]
    # which use G_list indices [1, 0, 3, 2].
    G_stack = jnp.stack([G_list[1], G_list[0], G_list[3], G_list[2]], axis=0)
    return {
        "G": G_stack.astype(jnp.float32),                                # (4,N,N)
        "W_hg": xavier(ks[0], (4, dim_in, dim_hidden)),                  # per-edge
        "b_hg": 0.01 * jax.random.normal(ks[1], (4, 1, dim_hidden), jnp.float32),
        "h_att": xavier(ks[2], (1, dim_hidden), gain=1.414),
        "W_att": xavier(ks[3], (dim_hidden, ah), gain=1.414),
        "a_att": xavier(ks[4], (2 * ah, 1), gain=1.414),
        "W_fc": xavier(ks[5], (dim_hidden, dim_out)),
        "b_fc": 0.01 * jax.random.normal(ks[6], (1, dim_out), jnp.float32),
    }


# ----------------------------------------------------------------------------
# Tiling heuristic
# ----------------------------------------------------------------------------
def _pick_tm(bt):
    kind = ""
    try:
        kind = jax.devices()[0].device_kind.lower()
    except Exception:
        pass
    # v7x-class chips have 2 TensorCores -> prefer >=2 (even) grid steps.
    two_tc = ("v7" in kind) or ("7x" in kind) or ("tpu7" in kind)
    cap = 256                      # keeps per-step f32 temporaries at a few MiB
    if bt > cap:
        return cap
    if two_tc and bt >= 16:
        return _round_up(pl.cdiv(bt, 2), 8)
    return _round_up(bt, 8)        # single-TC (v5e/v6e): one big tile


# ----------------------------------------------------------------------------
# Forward wrapper
# ----------------------------------------------------------------------------
def dhg_layer_forward(params, feats, *, tm=None, matmul_dtype=jnp.bfloat16):
    """feats: (B,T,N,Cin) -> x: (B,T,N,Cout), scores: (B,T,4,N,1)."""
    f32 = jnp.float32
    B, T, N, Cin = feats.shape
    BT = B * T
    K, _, Ch = params["W_hg"].shape
    Ah = params["W_att"].shape[1]
    Cout = params["W_fc"].shape[1]
    CinN, NCh, KNCh, KN, NCout = Cin * N, N * Ch, K * N * Ch, K * N, N * Cout
    md = matmul_dtype

    # ---- wrapper-side (XLA) prep: fold G into W, build block-diag operators,
    # pre-transpose X to its lane-dense layout (all cheap, done once per call).
    # M[(cin,j), (k,i,d)] = G_k[i,j] * W_k[cin,d]
    M = jnp.einsum("kij,kcd->cjkid", params["G"],
                   params["W_hg"]).reshape(CinN, KNCh)
    b_big = jnp.broadcast_to(params["b_hg"].reshape(K, 1, Ch),
                             (K, N, Ch)).reshape(1, KNCh)
    v_att = params["W_att"] @ params["a_att"][:Ah]                       # (Ch,1)
    c_att = ((params["h_att"] @ params["W_att"])
             @ params["a_att"][Ah:]).reshape(1, 1)                       # (1,1)
    V_big = jnp.kron(jnp.eye(KN, dtype=f32), v_att)                      # (KNCh,KN)
    E_big = jnp.kron(jnp.eye(KN, dtype=f32), jnp.ones((1, Ch), f32))     # (KN,KNCh)
    Wfc_blk = jnp.kron(jnp.eye(N, dtype=f32), params["W_fc"])            # (NCh,NCout)
    bfc_big = jnp.tile(params["b_fc"].reshape(1, Cout), (1, N))          # (1,NCout)

    # X: (B,T,N,Cin) -> (BT, Cin*N) with lanes ordered (cin, node).
    x_t = feats.reshape(BT, N, Cin).transpose(0, 2, 1).reshape(BT, CinN).astype(md)

    # ---- tiling: pad rows so the tile is never degenerate -------------------
    if tm is None:
        tm = _pick_tm(BT)
    tm = _round_up(max(1, min(tm, BT)), 8)
    BT_pad = _round_up(BT, tm)
    if BT_pad != BT:
        x_t = jnp.pad(x_t, ((0, BT_pad - BT), (0, 0)))
    grid = BT_pad // tm

    itemsize = jnp.dtype(md).itemsize
    cost = pl.CostEstimate(
        flops=2 * BT_pad * (CinN * KNCh + KNCh * KN + KN * KNCh + NCh * NCout),
        transcendentals=BT_pad * KN,
        bytes_accessed=(BT_pad * CinN * itemsize
                        + (CinN * KNCh + NCh * NCout) * itemsize
                        + (KNCh * KN + KN * KNCh + KNCh + NCout) * 4
                        + BT_pad * (NCout + KN) * 4),
    )

    kern = functools.partial(fused_dhg_kernel, n_nodes=N, n_edges=K, slope=0.01)
    out, scores = pl.pallas_call(
        kern,
        out_shape=(jax.ShapeDtypeStruct((BT_pad, NCout), f32),
                   jax.ShapeDtypeStruct((BT_pad, KN), f32)),
        grid_spec=pltpu.PrefetchScalarGridSpec(
            num_scalar_prefetch=0,
            grid=(grid,),
            in_specs=[
                pl.BlockSpec((tm, CinN), lambda i: (i, 0)),        # X (streamed)
                # Constant-index operands (index always (0,0)); small enough
                # that default double-buffering costs <1 MiB of VMEM.
                pl.BlockSpec((CinN, KNCh), lambda i: (0, 0)),      # fused G*W
                pl.BlockSpec((1, KNCh), lambda i: (0, 0)),         # bias (tiled)
                pl.BlockSpec((KNCh, KN), lambda i: (0, 0)),        # blkdiag v_att
                pl.BlockSpec((KN, KNCh), lambda i: (0, 0)),        # score expander
                pl.BlockSpec((NCh, NCout), lambda i: (0, 0)),      # blkdiag W_fc
                pl.BlockSpec((1, NCout), lambda i: (0, 0)),        # b_fc (tiled)
                pl.BlockSpec(memory_space=pltpu.MemorySpace.SMEM), # scalar c_att
            ],
            out_specs=(pl.BlockSpec((tm, NCout), lambda i: (i, 0)),
                       pl.BlockSpec((tm, KN), lambda i: (i, 0))),
        ),
        compiler_params=pltpu.CompilerParams(
            dimension_semantics=("parallel",),
            vmem_limit_bytes=32 * 1024 * 1024),
        cost_estimate=cost,
    )(x_t, M.astype(md), b_big, V_big, E_big, Wfc_blk.astype(md), bfc_big, c_att)

    x = out[:BT].reshape(B, T, N, Cout)
    s = scores[:BT].reshape(B, T, K, N)[..., None]                 # (B,T,4,N,1)
    return x, s


# ----------------------------------------------------------------------------
# Plain-JAX reference of the same (assumed) math, for self-checking.
# ----------------------------------------------------------------------------
def dhg_layer_reference(params, feats):
    B, T, N, Cin = feats.shape
    K = params["G"].shape[0]
    Ah = params["W_att"].shape[1]
    X = feats.reshape(B * T, N, Cin)
    H = []
    for k in range(K):
        gx = jnp.einsum("ij,mjc->mic", params["G"][k], X)
        h = gx @ params["W_hg"][k] + params["b_hg"][k]
        H.append(jax.nn.relu(h))
    ft = jnp.stack(H, axis=1)                                       # (BT,4,N,Ch)
    Wf = ft @ params["W_att"]
    Wh = params["h_att"] @ params["W_att"]                          # (1,Ah)
    e = Wf @ params["a_att"][:Ah] + (Wh @ params["a_att"][Ah:])     # (BT,4,N,1)
    e = jnp.where(e > 0, e, 0.01 * e)
    scores = jax.nn.softmax(e, axis=1)
    agg = jax.nn.relu(jnp.sum(scores * ft, axis=1))                 # (BT,N,Ch)
    out = jax.nn.relu(agg @ params["W_fc"] + params["b_fc"])
    x = out.reshape(B, T, N, -1)
    s = scores.reshape(B, T, K, N, 1)
    return x, s


if __name__ == "__main__":
    B, T, N = 2, 4, 8
    dim_in, dim_hidden, dim_out = 16, 32, 16

    key = jax.random.PRNGKey(0)
    k_feat, k_g, k_par = jax.random.split(key, 3)

    feats = jax.random.normal(k_feat, (B, T, N, dim_in), jnp.float32)

    # Four deterministic row-normalized hypergraph propagation matrices.
    gkeys = jax.random.split(k_g, 4)
    G_list = []
    for gk in gkeys:
        g = jnp.abs(jax.random.normal(gk, (N, N), jnp.float32)) + 0.1
        g = g / jnp.sum(g, axis=1, keepdims=True)
        G_list.append(g)

    params = init_dhg_params(k_par, dim_in, dim_hidden, dim_out, G_list)

    # Default path: bf16 matmul operands, f32 accumulation + f32 elementwise.
    x, scores = jax.jit(dhg_layer_forward)(params, feats)
    jax.block_until_ready((x, scores))
    assert x.shape == (B, T, N, dim_out)
    assert scores.shape == (B, T, 4, N, 1)

    x_ref, s_ref = dhg_layer_reference(params, feats)
    assert jnp.allclose(x, x_ref, rtol=5e-2, atol=1e-2)
    assert jnp.allclose(scores, s_ref, rtol=5e-2, atol=1e-2)

    # f32 matmul path: tight check of the fused-kernel math itself.
    x32, s32 = jax.jit(functools.partial(
        dhg_layer_forward, matmul_dtype=jnp.float32))(params, feats)
    jax.block_until_ready((x32, s32))
    assert jnp.allclose(x32, x_ref, rtol=1e-2, atol=1e-3)
    assert jnp.allclose(s32, s_ref, rtol=1e-2, atol=1e-3)

    print("KERNEL_OK")
</pallas_src>

<mosaic_0001>
module attributes {stable_mosaic.version = 11 : i64} {
  func.func @fused_dhg_kernel(%arg0: i32, %arg1: memref<8x128xbf16, #tpu.memory_space<vmem>>, %arg2: memref<128x1024xbf16, #tpu.memory_space<vmem>>, %arg3: memref<1x1024xf32, #tpu.memory_space<vmem>>, %arg4: memref<1024x32xf32, #tpu.memory_space<vmem>>, %arg5: memref<32x1024xf32, #tpu.memory_space<vmem>>, %arg6: memref<256x128xbf16, #tpu.memory_space<vmem>>, %arg7: memref<1x128xf32, #tpu.memory_space<vmem>>, %arg8: memref<1x1xf32, #tpu.memory_space<smem>>, %arg9: memref<8x128xf32, #tpu.memory_space<vmem>>, %arg10: memref<8x32xf32, #tpu.memory_space<vmem>>) attributes {dimension_semantics = [#tpu.dimension_semantics<parallel>], iteration_bounds = array<i64: 1>, scalar_prefetch = 0 : i64, scratch_operands = 0 : i64, tpu.core_type = #tpu.core_type<tc>, window_params = [{transform_indices = @transform_0, window_bounds = array<i64: 8, 128>}, {pipeline_mode = #tpu.pipeline_mode<synchronous>, transform_indices = @transform_1, window_bounds = array<i64: 128, 1024>}, {pipeline_mode = #tpu.pipeline_mode<synchronous>, transform_indices = @transform_2, window_bounds = array<i64: 1, 1024>}, {pipeline_mode = #tpu.pipeline_mode<synchronous>, transform_indices = @transform_3, window_bounds = array<i64: 1024, 32>}, {pipeline_mode = #tpu.pipeline_mode<synchronous>, transform_indices = @transform_4, window_bounds = array<i64: 32, 1024>}, {pipeline_mode = #tpu.pipeline_mode<synchronous>, transform_indices = @transform_5, window_bounds = array<i64: 256, 128>}, {pipeline_mode = #tpu.pipeline_mode<synchronous>, transform_indices = @transform_6, window_bounds = array<i64: 1, 128>}, {transform_indices = @transform_7, window_bounds = array<i64: 1, 1>}, {transform_indices = @transform_8, window_bounds = array<i64: 8, 128>}, {transform_indices = @transform_9, window_bounds = array<i64: 8, 32>}]} {
    %c0 = arith.constant 0 : index
    %c0_0 = arith.constant 0 : index
    %0 = vector.load %arg1[%c0, %c0_0] : memref<8x128xbf16, #tpu.memory_space<vmem>>, vector<8x128xbf16>
    %c0_1 = arith.constant 0 : index
    %c0_2 = arith.constant 0 : index
    %1 = vector.load %arg2[%c0_1, %c0_2] : memref<128x1024xbf16, #tpu.memory_space<vmem>>, vector<128x1024xbf16>
    %cst = arith.constant dense<0.000000e+00> : vector<8x1024xf32>
    %2 = tpu.matmul %0, %1, %cst {dimension_numbers = #tpu.dot_dimension_numbers<[1], [0], [0], [1], [0, 0, 1, 1], [], []>} : vector<8x128xbf16>, vector<128x1024xbf16>, vector<8x1024xf32> -> vector<8x1024xf32>
    %c0_3 = arith.constant 0 : index
    %c0_4 = arith.constant 0 : index
    %3 = vector.load %arg3[%c0_3, %c0_4] : memref<1x1024xf32, #tpu.memory_space<vmem>>, vector<1x1024xf32>
    %4 = vector.broadcast %3 : vector<1x1024xf32> to vector<8x1024xf32>
    %5 = arith.addf %2, %4 : vector<8x1024xf32>
    %cst_5 = arith.constant 0.000000e+00 : f32
    %6 = vector.broadcast %cst_5 : f32 to vector<8x1024xf32>
    %7 = arith.maximumf %5, %6 : vector<8x1024xf32>
    %c0_6 = arith.constant 0 : index
    %c0_7 = arith.constant 0 : index
    %8 = vector.load %arg4[%c0_6, %c0_7] : memref<1024x32xf32, #tpu.memory_space<vmem>>, vector<1024x32xf32>
    %cst_8 = arith.constant dense<0.000000e+00> : vector<8x32xf32>
    %9 = tpu.matmul %7, %8, %cst_8 {dimension_numbers = #tpu.dot_dimension_numbers<[1], [0], [0], [1], [0, 0, 1, 1], [], []>} : vector<8x1024xf32>, vector<1024x32xf32>, vector<8x32xf32> -> vector<8x32xf32>
    %c0_9 = arith.constant 0 : index
    %c0_10 = arith.constant 0 : index
    %10 = memref.load %arg8[%c0_9, %c0_10] : memref<1x1xf32, #tpu.memory_space<smem>>
    %11 = vector.broadcast %10 : f32 to vector<8x32xf32>
    %12 = arith.addf %9, %11 : vector<8x32xf32>
    %cst_11 = arith.constant 0.000000e+00 : f32
    %13 = vector.broadcast %cst_11 : f32 to vector<8x32xf32>
    %14 = arith.cmpf ogt, %12, %13 : vector<8x32xf32>
    %cst_12 = arith.constant 0.00999999977 : f32
    %15 = vector.broadcast %cst_12 : f32 to vector<8x32xf32>
    %16 = arith.mulf %15, %12 : vector<8x32xf32>
    %17 = arith.select %14, %12, %16 : vector<8x32xi1>, vector<8x32xf32>
    %18 = vector.extract_strided_slice %17 {offsets = [0, 0], sizes = [8, 8], strides = [1, 1]} : vector<8x32xf32> to vector<8x8xf32>
    %19 = vector.extract_strided_slice %17 {offsets = [0, 8], sizes = [8, 8], strides = [1, 1]} : vector<8x32xf32> to vector<8x8xf32>
    %20 = vector.extract_strided_slice %17 {offsets = [0, 16], sizes = [8, 8], strides = [1, 1]} : vector<8x32xf32> to vector<8x8xf32>
    %21 = vector.extract_strided_slice %17 {offsets = [0, 24], sizes = [8, 8], strides = [1, 1]} : vector<8x32xf32> to vector<8x8xf32>
    %22 = arith.maximumf %18, %19 : vector<8x8xf32>
    %23 = arith.maximumf %22, %20 : vector<8x8xf32>
    %24 = arith.maximumf %23, %21 : vector<8x8xf32>
    %25 = arith.subf %18, %24 : vector<8x8xf32>
    %26 = math.exp %25 : vector<8x8xf32>
    %27 = arith.subf %19, %24 : vector<8x8xf32>
    %28 = math.exp %27 : vector<8x8xf32>
    %29 = arith.subf %20, %24 : vector<8x8xf32>
    %30 = math.exp %29 : vector<8x8xf32>
    %31 = arith.subf %21, %24 : vector<8x8xf32>
    %32 = math.exp %31 : vector<8x8xf32>
    %33 = arith.addf %26, %28 : vector<8x8xf32>
    %34 = arith.addf %33, %30 : vector<8x8xf32>
    %35 = arith.addf %34, %32 : vector<8x8xf32>
    %36 = tpu.reciprocal %35 : vector<8x8xf32> -> vector<8x8xf32>
    %37 = arith.mulf %26, %36 : vector<8x8xf32>
    %38 = arith.mulf %28, %36 : vector<8x8xf32>
    %39 = arith.mulf %30, %36 : vector<8x8xf32>
    %40 = arith.mulf %32, %36 : vector<8x8xf32>
    %41 = tpu.concatenate %37, %38, %39, %40 in 1 : vector<8x8xf32>, vector<8x8xf32>, vector<8x8xf32>, vector<8x8xf32> -> vector<8x32xf32>
    %c0_13 = arith.constant 0 : index
    %c0_14 = arith.constant 0 : index
    %42 = vector.load %arg5[%c0_13, %c0_14] : memref<32x1024xf32, #tpu.memory_space<vmem>>, vector<32x1024xf32>
    %cst_15 = arith.constant dense<0.000000e+00> : vector<8x1024xf32>
    %43 = tpu.matmul %41, %42, %cst_15 {dimension_numbers = #tpu.dot_dimension_numbers<[1], [0], [0], [1], [0, 0, 1, 1], [], []>} : vector<8x32xf32>, vector<32x1024xf32>, vector<8x1024xf32> -> vector<8x1024xf32>
    %44 = arith.mulf %43, %7 : vector<8x1024xf32>
    %45 = vector.extract_strided_slice %44 {offsets = [0, 0], sizes = [8, 256], strides = [1, 1]} : vector<8x1024xf32> to vector<8x256xf32>
    %46 = vector.extract_strided_slice %44 {offsets = [0, 256], sizes = [8, 256], strides = [1, 1]} : vector<8x1024xf32> to vector<8x256xf32>
    %47 = arith.addf %45, %46 : vector<8x256xf32>
    %48 = vector.extract_strided_slice %44 {offsets = [0, 512], sizes = [8, 256], strides = [1, 1]} : vector<8x1024xf32> to vector<8x256xf32>
    %49 = arith.addf %47, %48 : vector<8x256xf32>
    %50 = vector.extract_strided_slice %44 {offsets = [0, 768], sizes = [8, 256], strides = [1, 1]} : vector<8x1024xf32> to vector<8x256xf32>
    %51 = arith.addf %49, %50 : vector<8x256xf32>
    %cst_16 = arith.constant 0.000000e+00 : f32
    %52 = vector.broadcast %cst_16 : f32 to vector<8x256xf32>
    %53 = arith.maximumf %51, %52 : vector<8x256xf32>
    %54 = arith.truncf %53 : vector<8x256xf32> to vector<8x256xbf16>
    %c0_17 = arith.constant 0 : index
    %c0_18 = arith.constant 0 : index
    %55 = vector.load %arg6[%c0_17, %c0_18] : memref<256x128xbf16, #tpu.memory_space<vmem>>, vector<256x128xbf16>
    %cst_19 = arith.constant dense<0.000000e+00> : vector<8x128xf32>
    %56 = tpu.matmul %54, %55, %cst_19 {dimension_numbers = #tpu.dot_dimension_numbers<[1], [0], [0], [1], [0, 0, 1, 1], [], []>} : vector<8x256xbf16>, vector<256x128xbf16>, vector<8x128xf32> -> vector<8x128xf32>
    %c0_20 = arith.constant 0 : index
    %c0_21 = arith.constant 0 : index
    %57 = vector.load %arg7[%c0_20, %c0_21] : memref<1x128xf32, #tpu.memory_space<vmem>>, vector<1x128xf32>
    %58 = vector.broadcast %57 : vector<1x128xf32> to vector<8x128xf32>
    %59 = arith.addf %56, %58 : vector<8x128xf32>
    %cst_22 = arith.constant 0.000000e+00 : f32
    %60 = vector.broadcast %cst_22 : f32 to vector<8x128xf32>
    %61 = arith.maximumf %59, %60 : vector<8x128xf32>
    %c0_23 = arith.constant 0 : index
    %c0_24 = arith.constant 0 : index
    %62 = vector.load %arg9[%c0_23, %c0_24] : memref<8x128xf32, #tpu.memory_space<vmem>>, vector<8x128xf32>
    tpu.vector_store %arg9[%c0_23, %c0_24], %61 {strides = array<i32>} : memref<8x128xf32, #tpu.memory_space<vmem>>, vector<8x128xf32>,
    %c0_25 = arith.constant 0 : index
    %c0_26 = arith.constant 0 : index
    %63 = vector.load %arg10[%c0_25, %c0_26] : memref<8x32xf32, #tpu.memory_space<vmem>>, vector<8x32xf32>
    tpu.vector_store %arg10[%c0_25, %c0_26], %41 {strides = array<i32>} : memref<8x32xf32, #tpu.memory_space<vmem>>, vector<8x32xf32>,
    return
  }
  func.func @transform_0(%arg0: i32) -> (i32, i32) {
    %c0_i32 = arith.constant 0 : i32
    %c0_i32_0 = arith.constant 0 : i32
    return %arg0, %c0_i32 : i32, i32
  }
  func.func @transform_1(%arg0: i32) -> (i32, i32) {
    %c0_i32 = arith.constant 0 : i32
    %c0_i32_0 = arith.constant 0 : i32
    %c0_i32_1 = arith.constant 0 : i32
    return %c0_i32, %c0_i32_0 : i32, i32
  }
  func.func @transform_2(%arg0: i32) -> (i32, i32) {
    %c0_i32 = arith.constant 0 : i32
    %c0_i32_0 = arith.constant 0 : i32
    %c0_i32_1 = arith.constant 0 : i32
    return %c0_i32, %c0_i32_0 : i32, i32
  }
  func.func @transform_3(%arg0: i32) -> (i32, i32) {
    %c0_i32 = arith.constant 0 : i32
    %c0_i32_0 = arith.constant 0 : i32
    %c0_i32_1 = arith.constant 0 : i32
    return %c0_i32, %c0_i32_0 : i32, i32
  }
  func.func @transform_4(%arg0: i32) -> (i32, i32) {
    %c0_i32 = arith.constant 0 : i32
    %c0_i32_0 = arith.constant 0 : i32
    %c0_i32_1 = arith.constant 0 : i32
    return %c0_i32, %c0_i32_0 : i32, i32
  }
  func.func @transform_5(%arg0: i32) -> (i32, i32) {
    %c0_i32 = arith.constant 0 : i32
    %c0_i32_0 = arith.constant 0 : i32
    %c0_i32_1 = arith.constant 0 : i32
    return %c0_i32, %c0_i32_0 : i32, i32
  }
  func.func @transform_6(%arg0: i32) -> (i32, i32) {
    %c0_i32 = arith.constant 0 : i32
    %c0_i32_0 = arith.constant 0 : i32
    %c0_i32_1 = arith.constant 0 : i32
    return %c0_i32, %c0_i32_0 : i32, i32
  }
  func.func @transform_7(%arg0: i32) -> (i32, i32) {
    %c0_i32 = arith.constant 0 : i32
    %c0_i32_0 = arith.constant 0 : i32
    %c0_i32_1 = arith.constant 0 : i32
    return %c0_i32, %c0_i32_0 : i32, i32
  }
  func.func @transform_8(%arg0: i32) -> (i32, i32) {
    %c0_i32 = arith.constant 0 : i32
    %c0_i32_0 = arith.constant 0 : i32
    return %arg0, %c0_i32 : i32, i32
  }
  func.func @transform_9(%arg0: i32) -> (i32, i32) {
    %c0_i32 = arith.constant 0 : i32
    %c0_i32_0 = arith.constant 0 : i32
    return %arg0, %c0_i32 : i32, i32
  }
}

</mosaic_0001>

<llo_original>
// kernel: dhg_layer_forward.1
$region0: #{dhg_layer_forward.1}
  #allocation0 [shape = 'u32[]', space=smem, size = 0x4, offset = 0x4, fixed_abs, tag = 'smem constant byte address 0x4 - core index']
  #allocation1 [shape = 'u32[144,128]{1,0:T(1,128)}', space=vmem, size = 0x12000, scoped, tag = 'internal scratch']
  #allocation2 [shape = 'f32[1,1]{1,0:T(1,128)S(6)}', space=smem, size = 0x200, scoped, tag = 'scoped memory for dhg_layer_forward.1']
  %s0 = inlined_call_operand.vmem [shape: bf16[8,128], index: 0, kind: input, shape index: {}]
  %s1 = inlined_call_operand.vmem [shape: bf16[128,1024], index: 1, kind: input, shape index: {}]
  %s2 = inlined_call_operand.vmem [shape: f32[1,1024], index: 2, kind: input, shape index: {}]
  %s3 = inlined_call_operand.vmem [shape: f32[1024,32], index: 3, kind: input, shape index: {}]
  %s4 = inlined_call_operand.vmem [shape: f32[32,1024], index: 4, kind: input, shape index: {}]
  %s5 = inlined_call_operand.vmem [shape: bf16[256,128], index: 5, kind: input, shape index: {}]
  %s6 = inlined_call_operand.vmem [shape: f32[1,128], index: 6, kind: input, shape index: {}]
  %s7 = inlined_call_operand.<no memory space> [shape: f32[1,1], index: 7, kind: input, shape index: {}]
  %s8 = inlined_call_operand.vmem [shape: f32[8,128], index: 8, kind: output, shape index: {0}]
  %s9 = inlined_call_operand.vmem [shape: f32[8,32], index: 9, kind: output, shape index: {1}]
  %10 = xla_tuple %s8, %s9
  %s11 = sld [smem:[#allocation0]]
  $region50: #{dhg_layer_forward.1} parent=0
    _
  %s13 = ssub.s32 1, %s11
  %s14 = scalar_select 0, %s13, %s11
  %15 = sst [smem:[#allocation2]] %s7
  // Predicated region
  $region2: #{dhg_layer_forward.1} parent=0 // pred_check
    _
  $region3: #{dhg_layer_forward.1} parent=0 // pred_check_branch
    %17 = sbr.rel (0) target = $region5
  $region4: #{dhg_layer_forward.1} parent=0 // pred_region
    _
  $region5: #{dhg_layer_forward.1} parent=0 // pred_fallthru
    _
  // Predicated region
  $region6: #{dhg_layer_forward.1} parent=0 // pred_check
    _
  $region7: #{dhg_layer_forward.1} parent=0 // pred_check_branch
    %19 = sbr.rel (0) target = $region9
  $region8: #{dhg_layer_forward.1} parent=0 // pred_region
    _
  $region9: #{dhg_layer_forward.1} parent=0 // pred_fallthru
    _
  // Predicated region
  $region10: #{dhg_layer_forward.1} parent=0 // pred_check
    _
  $region11: #{dhg_layer_forward.1} parent=0 // pred_check_branch
    %21 = sbr.rel (0) target = $region13
  $region12: #{dhg_layer_forward.1} parent=0 // pred_region
    _
  $region13: #{dhg_layer_forward.1} parent=0 // pred_fallthru
    _
  // Predicated region
  $region14: #{dhg_layer_forward.1} parent=0 // pred_check
    _
  $region15: #{dhg_layer_forward.1} parent=0 // pred_check_branch
    %23 = sbr.rel (0) target = $region17
  $region16: #{dhg_layer_forward.1} parent=0 // pred_region
    _
  $region17: #{dhg_layer_forward.1} parent=0 // pred_fallthru
    _
  // Predicated region
  $region18: #{dhg_layer_forward.1} parent=0 // pred_check
    _
  $region19: #{dhg_layer_forward.1} parent=0 // pred_check_branch
    %25 = sbr.rel (0) target = $region21
  $region20: #{dhg_layer_forward.1} parent=0 // pred_region
    _
  $region21: #{dhg_layer_forward.1} parent=0 // pred_fallthru
    _
  // Predicated region
  $region22: #{dhg_layer_forward.1} parent=0 // pred_check
    _
  $region23: #{dhg_layer_forward.1} parent=0 // pred_check_branch
    %27 = sbr.rel (0) target = $region25
  $region24: #{dhg_layer_forward.1} parent=0 // pred_region
    _
  $region25: #{dhg_layer_forward.1} parent=0 // pred_fallthru
    _
  // Predicated region
  $region26: #{dhg_layer_forward.1} parent=0 // pred_check
    _
  $region27: #{dhg_layer_forward.1} parent=0 // pred_check_branch
    %29 = sbr.rel (0) target = $region29
  $region28: #{dhg_layer_forward.1} parent=0 // pred_region
    _
  $region29: #{dhg_layer_forward.1} parent=0 // pred_fallthru
    _
  // Predicated region
  $region30: #{dhg_layer_forward.1} parent=0 // pred_check
    _
  $region31: #{dhg_layer_forward.1} parent=0 // pred_check_branch
    %31 = sbr.rel (0) target = $region33
  $region32: #{dhg_layer_forward.1} parent=0 // pred_region
    _
  $region33: #{dhg_layer_forward.1} parent=0 // pred_fallthru
    _
  %v33 = vld [vmem:[%s0] sm:$0xf]
  %v34 = vld [vmem:[%s1] sm:$0xff]
  %v35 = vld [vmem:[%s1 + $0x8] sm:$0xff]
  %v36 = vld [vmem:[%s1 + $0x10] sm:$0xff]
  %v37 = vld [vmem:[%s1 + $0x18] sm:$0xff]
  %v38 = vld [vmem:[%s1 + $0x20] sm:$0xff]
  %v39 = vld [vmem:[%s1 + $0x28] sm:$0xff]
  %v40 = vld [vmem:[%s1 + $0x30] sm:$0xff]
  %v41 = vld [vmem:[%s1 + $0x38] sm:$0xff]
  %v42 = vld [vmem:[%s1 + $0x40] sm:$0xff]
  %v43 = vld [vmem:[%s1 + $0x48] sm:$0xff]
  %v44 = vld [vmem:[%s1 + $0x50] sm:$0xff]
  %v45 = vld [vmem:[%s1 + $0x58] sm:$0xff]
  %v46 = vld [vmem:[%s1 + $0x60] sm:$0xff]
  %v47 = vld [vmem:[%s1 + $0x68] sm:$0xff]
  %v48 = vld [vmem:[%s1 + $0x70] sm:$0xff]
  %v49 = vld [vmem:[%s1 + $0x78] sm:$0xff]
  %v50 = vld [vmem:[%s1 + $0x80] sm:$0xff]
  %v51 = vld [vmem:[%s1 + $0x88] sm:$0xff]
  %v52 = vld [vmem:[%s1 + $0x90] sm:$0xff]
  %v53 = vld [vmem:[%s1 + $0x98] sm:$0xff]
  %v54 = vld [vmem:[%s1 + $0xa0] sm:$0xff]
  %v55 = vld [vmem:[%s1 + $0xa8] sm:$0xff]
  %v56 = vld [vmem:[%s1 + $0xb0] sm:$0xff]
  %v57 = vld [vmem:[%s1 + $0xb8] sm:$0xff]
  %v58 = vld [vmem:[%s1 + $0xc0] sm:$0xff]
  %v59 = vld [vmem:[%s1 + $0xc8] sm:$0xff]
  %v60 = vld [vmem:[%s1 + $0xd0] sm:$0xff]
  %v61 = vld [vmem:[%s1 + $0xd8] sm:$0xff]
  %v62 = vld [vmem:[%s1 + $0xe0] sm:$0xff]
  %v63 = vld [vmem:[%s1 + $0xe8] sm:$0xff]
  %v64 = vld [vmem:[%s1 + $0xf0] sm:$0xff]
  %v65 = vld [vmem:[%s1 + $0xf8] sm:$0xff]
  %v66 = vld [vmem:[%s1 + $0x100] sm:$0xff]
  %v67 = vld [vmem:[%s1 + $0x108] sm:$0xff]
  %v68 = vld [vmem:[%s1 + $0x110] sm:$0xff]
  %v69 = vld [vmem:[%s1 + $0x118] sm:$0xff]
  %v70 = vld [vmem:[%s1 + $0x120] sm:$0xff]
  %v71 = vld [vmem:[%s1 + $0x128] sm:$0xff]
  %v72 = vld [vmem:[%s1 + $0x130] sm:$0xff]
  %v73 = vld [vmem:[%s1 + $0x138] sm:$0xff]
  %v74 = vld [vmem:[%s1 + $0x140] sm:$0xff]
  %v75 = vld [vmem:[%s1 + $0x148] sm:$0xff]
  %v76 = vld [vmem:[%s1 + $0x150] sm:$0xff]
  %v77 = vld [vmem:[%s1 + $0x158] sm:$0xff]
  %v78 = vld [vmem:[%s1 + $0x160] sm:$0xff]
  %v79 = vld [vmem:[%s1 + $0x168] sm:$0xff]
  %v80 = vld [vmem:[%s1 + $0x170] sm:$0xff]
  %v81 = vld [vmem:[%s1 + $0x178] sm:$0xff]
  %v82 = vld [vmem:[%s1 + $0x180] sm:$0xff]
  %v83 = vld [vmem:[%s1 + $0x188] sm:$0xff]
  %v84 = vld [vmem:[%s1 + $0x190] sm:$0xff]
  %v85 = vld [vmem:[%s1 + $0x198] sm:$0xff]
  %v86 = vld [vmem:[%s1 + $0x1a0] sm:$0xff]
  %v87 = vld [vmem:[%s1 + $0x1a8] sm:$0xff]
  %v88 = vld [vmem:[%s1 + $0x1b0] sm:$0xff]
  %v89 = vld [vmem:[%s1 + $0x1b8] sm:$0xff]
  %v90 = vld [vmem:[%s1 + $0x1c0] sm:$0xff]
  %v91 = vld [vmem:[%s1 + $0x1c8] sm:$0xff]
  %v92 = vld [vmem:[%s1 + $0x1d0] sm:$0xff]
  %v93 = vld [vmem:[%s1 + $0x1d8] sm:$0xff]
  %v94 = vld [vmem:[%s1 + $0x1e0] sm:$0xff]
  %v95 = vld [vmem:[%s1 + $0x1e8] sm:$0xff]
  %v96 = vld [vmem:[%s1 + $0x1f0] sm:$0xff]
  %v97 = vld [vmem:[%s1 + $0x1f8] sm:$0xff]
  %v98 = vld [vmem:[%s2] sm:$0xff]
  %v100 = vlaneseq
  %v101 = vshrl.u32 %v100, 7
  %v102 = vsub.s32 0, %v101
  %v103 = vrot.slane %v98, %v102
  %v104 = vlaneseq
  %v105 = vshrl.u32 %v104, 7
  %v106 = vsub.s32 1, %v105
  %v107 = vrot.slane %v98, %v106
  %v108 = vlaneseq
  %v109 = vshrl.u32 %v108, 7
  %v110 = vsub.s32 2, %v109
  %v111 = vrot.slane %v98, %v110
  %v112 = vlaneseq
  %v113 = vshrl.u32 %v112, 7
  %v114 = vsub.s32 3, %v113
  %v115 = vrot.slane %v98, %v114
  %v116 = vlaneseq
  %v117 = vshrl.u32 %v116, 7
  %v118 = vsub.s32 4, %v117
  %v119 = vrot.slane %v98, %v118
  %v120 = vlaneseq
  %v121 = vshrl.u32 %v120, 7
  %v122 = vsub.s32 5, %v121
  %v123 = vrot.slane %v98, %v122
  %v124 = vlaneseq
  %v125 = vshrl.u32 %v124, 7
  %v126 = vsub.s32 6, %v125
  %v127 = vrot.slane %v98, %v126
  %v128 = vlaneseq
  %v129 = vshrl.u32 %v128, 7
  %v130 = vsub.s32 7, %v129
  %v131 = vrot.slane %v98, %v130
  %v204 = vunpack.c.l.b16 %v34
  %v205 = vunpack.c.h.b16 %v34
  %v206 = vunpack.c.l.b16 %v35
  %v207 = vunpack.c.h.b16 %v35
  %v208 = vunpack.c.l.b16 %v36
  %v209 = vunpack.c.h.b16 %v36
  %v210 = vunpack.c.l.b16 %v37
  %v211 = vunpack.c.h.b16 %v37
  %v212 = vunpack.c.l.b16 %v38
  %v213 = vunpack.c.h.b16 %v38
  %v214 = vunpack.c.l.b16 %v39
  %v215 = vunpack.c.h.b16 %v39
  %v216 = vunpack.c.l.b16 %v40
  %v217 = vunpack.c.h.b16 %v40
  %v218 = vunpack.c.l.b16 %v41
  %v219 = vunpack.c.h.b16 %v41
  %v220 = vunpack.c.l.b16 %v42
  %v221 = vunpack.c.h.b16 %v42
  %v222 = vunpack.c.l.b16 %v43
  %v223 = vunpack.c.h.b16 %v43
  %v224 = vunpack.c.l.b16 %v44
  %v225 = vunpack.c.h.b16 %v44
  %v226 = vunpack.c.l.b16 %v45
  %v227 = vunpack.c.h.b16 %v45
  %v228 = vunpack.c.l.b16 %v46
  %v229 = vunpack.c.h.b16 %v46
  %v230 = vunpack.c.l.b16 %v47
  %v231 = vunpack.c.h.b16 %v47
  %v232 = vunpack.c.l.b16 %v48
  %v233 = vunpack.c.h.b16 %v48
  %v234 = vunpack.c.l.b16 %v49
  %v235 = vunpack.c.h.b16 %v49
  %v236 = vunpack.c.l.b16 %v50
  %v237 = vunpack.c.h.b16 %v50
  %v238 = vunpack.c.l.b16 %v51
  %v239 = vunpack.c.h.b16 %v51
  %v240 = vunpack.c.l.b16 %v52
  %v241 = vunpack.c.h.b16 %v52
  %v242 = vunpack.c.l.b16 %v53
  %v243 = vunpack.c.h.b16 %v53
  %v244 = vunpack.c.l.b16 %v54
  %v245 = vunpack.c.h.b16 %v54
  %v246 = vunpack.c.l.b16 %v55
  %v247 = vunpack.c.h.b16 %v55
  %v248 = vunpack.c.l.b16 %v56
  %v249 = vunpack.c.h.b16 %v56
  %v250 = vunpack.c.l.b16 %v57
  %v251 = vunpack.c.h.b16 %v57
  %v252 = vunpack.c.l.b16 %v58
  %v253 = vunpack.c.h.b16 %v58
  %v254 = vunpack.c.l.b16 %v59
  %v255 = vunpack.c.h.b16 %v59
  %v256 = vunpack.c.l.b16 %v60
  %v257 = vunpack.c.h.b16 %v60
  %v258 = vunpack.c.l.b16 %v61
  %v259 = vunpack.c.h.b16 %v61
  %v260 = vunpack.c.l.b16 %v62
  %v261 = vunpack.c.h.b16 %v62
  %v262 = vunpack.c.l.b16 %v63
  %v263 = vunpack.c.h.b16 %v63
  %v264 = vunpack.c.l.b16 %v64
  %v265 = vunpack.c.h.b16 %v64
  %v266 = vunpack.c.l.b16 %v65
  %v267 = vunpack.c.h.b16 %v65
  %v268 = vunpack.c.l.b16 %v66
  %v269 = vunpack.c.h.b16 %v66
  %v270 = vunpack.c.l.b16 %v67
  %v271 = vunpack.c.h.b16 %v67
  %v272 = vunpack.c.l.b16 %v68
  %v273 = vunpack.c.h.b16 %v68
  %v274 = vunpack.c.l.b16 %v69
  %v275 = vunpack.c.h.b16 %v69
  %v276 = vunpack.c.l.b16 %v70
  %v277 = vunpack.c.h.b16 %v70
  %v278 = vunpack.c.l.b16 %v71
  %v279 = vunpack.c.h.b16 %v71
  %v280 = vunpack.c.l.b16 %v72
  %v281 = vunpack.c.h.b16 %v72
  %v282 = vunpack.c.l.b16 %v73
  %v283 = vunpack.c.h.b16 %v73
  %v284 = vunpack.c.l.b16 %v74
  %v285 = vunpack.c.h.b16 %v74
  %v286 = vunpack.c.l.b16 %v75
  %v287 = vunpack.c.h.b16 %v75
  %v288 = vunpack.c.l.b16 %v76
  %v289 = vunpack.c.h.b16 %v76
  %v290 = vunpack.c.l.b16 %v77
  %v291 = vunpack.c.h.b16 %v77
  %v292 = vunpack.c.l.b16 %v78
  %v293 = vunpack.c.h.b16 %v78
  %v294 = vunpack.c.l.b16 %v79
  %v295 = vunpack.c.h.b16 %v79
  %v296 = vunpack.c.l.b16 %v80
  %v297 = vunpack.c.h.b16 %v80
  %v298 = vunpack.c.l.b16 %v81
  %v299 = vunpack.c.h.b16 %v81
  %v300 = vunpack.c.l.b16 %v82
  %v301 = vunpack.c.h.b16 %v82
  %v302 = vunpack.c.l.b16 %v83
  %v303 = vunpack.c.h.b16 %v83
  %v304 = vunpack.c.l.b16 %v84
  %v305 = vunpack.c.h.b16 %v84
  %v306 = vunpack.c.l.b16 %v85
  %v307 = vunpack.c.h.b16 %v85
  %v308 = vunpack.c.l.b16 %v86
  %v309 = vunpack.c.h.b16 %v86
  %v310 = vunpack.c.l.b16 %v87
  %v311 = vunpack.c.h.b16 %v87
  %v312 = vunpack.c.l.b16 %v88
  %v313 = vunpack.c.h.b16 %v88
  %v314 = vunpack.c.l.b16 %v89
  %v315 = vunpack.c.h.b16 %v89
  %v316 = vunpack.c.l.b16 %v90
  %v317 = vunpack.c.h.b16 %v90
  %v318 = vunpack.c.l.b16 %v91
  %v319 = vunpack.c.h.b16 %v91
  %v320 = vunpack.c.l.b16 %v92
  %v321 = vunpack.c.h.b16 %v92
  %v322 = vunpack.c.l.b16 %v93
  %v323 = vunpack.c.h.b16 %v93
  %v324 = vunpack.c.l.b16 %v94
  %v325 = vunpack.c.h.b16 %v94
  %v326 = vunpack.c.l.b16 %v95
  %v327 = vunpack.c.h.b16 %v95
  %v328 = vunpack.c.l.b16 %v96
  %v329 = vunpack.c.h.b16 %v96
  %v330 = vunpack.c.l.b16 %v97
  %v331 = vunpack.c.h.b16 %v97
  %v332 = vpack.c.b16 %v212, %v204
  %v333 = vpack.c.b16 %v213, %v205
  %v334 = vpack.c.b16 %v214, %v206
  %v335 = vpack.c.b16 %v215, %v207
  %v336 = vpack.c.b16 %v216, %v208
  %v337 = vpack.c.b16 %v217, %v209
  %v338 = vpack.c.b16 %v218, %v210
  %v339 = vpack.c.b16 %v219, %v211
  %v340 = vpack.c.b16 %v228, %v220
  %v341 = vpack.c.b16 %v229, %v221
  %v342 = vpack.c.b16 %v230, %v222
  %v343 = vpack.c.b16 %v231, %v223
  %v344 = vpack.c.b16 %v232, %v224
  %v345 = vpack.c.b16 %v233, %v225
  %v346 = vpack.c.b16 %v234, %v226
  %v347 = vpack.c.b16 %v235, %v227
  %v348 = vpack.c.b16 %v244, %v236
  %v349 = vpack.c.b16 %v245, %v237
  %v350 = vpack.c.b16 %v246, %v238
  %v351 = vpack.c.b16 %v247, %v239
  %v352 = vpack.c.b16 %v248, %v240
  %v353 = vpack.c.b16 %v249, %v241
  %v354 = vpack.c.b16 %v250, %v242
  %v355 = vpack.c.b16 %v251, %v243
  %v356 = vpack.c.b16 %v260, %v252
  %v357 = vpack.c.b16 %v261, %v253
  %v358 = vpack.c.b16 %v262, %v254
  %v359 = vpack.c.b16 %v263, %v255
  %v360 = vpack.c.b16 %v264, %v256
  %v361 = vpack.c.b16 %v265, %v257
  %v362 = vpack.c.b16 %v266, %v258
  %v363 = vpack.c.b16 %v267, %v259
  %v364 = vpack.c.b16 %v276, %v268
  %v365 = vpack.c.b16 %v277, %v269
  %v366 = vpack.c.b16 %v278, %v270
  %v367 = vpack.c.b16 %v279, %v271
  %v368 = vpack.c.b16 %v280, %v272
  %v369 = vpack.c.b16 %v281, %v273
  %v370 = vpack.c.b16 %v282, %v274
  %v371 = vpack.c.b16 %v283, %v275
  %v372 = vpack.c.b16 %v292, %v284
  %v373 = vpack.c.b16 %v293, %v285
  %v374 = vpack.c.b16 %v294, %v286
  %v375 = vpack.c.b16 %v295, %v287
  %v376 = vpack.c.b16 %v296, %v288
  %v377 = vpack.c.b16 %v297, %v289
  %v378 = vpack.c.b16 %v298, %v290
  %v379 = vpack.c.b16 %v299, %v291
  %v380 = vpack.c.b16 %v308, %v300
  %v381 = vpack.c.b16 %v309, %v301
  %v382 = vpack.c.b16 %v310, %v302
  %v383 = vpack.c.b16 %v311, %v303
  %v384 = vpack.c.b16 %v312, %v304
  %v385 = vpack.c.b16 %v313, %v305
  %v386 = vpack.c.b16 %v314, %v306
  %v387 = vpack.c.b16 %v315, %v307
  %v388 = vpack.c.b16 %v324, %v316
  %v389 = vpack.c.b16 %v325, %v317
  %v390 = vpack.c.b16 %v326, %v318
  %v391 = vpack.c.b16 %v327, %v319
  %v392 = vpack.c.b16 %v328, %v320
  %v393 = vpack.c.b16 %v329, %v321
  %v394 = vpack.c.b16 %v330, %v322
  %v395 = vpack.c.b16 %v331, %v323
  %460 = vmatprep.subr.bf16.mxu0 %v333
  %461 = vmatpush1.bf16.msra.mxu0 %v332
  %462 = vmatprep.subr.bf16.mxu0 %v341
  %463 = vmatpush1.bf16.msra.mxu0 %v340
  %464 = vmatprep.subr.bf16.mxu0 %v349
  %465 = vmatpush1.bf16.msra.mxu0 %v348
  %466 = vmatprep.subr.bf16.mxu0 %v357
  %467 = vmatpush1.bf16.msra.mxu0 %v356
  %468 = vmatprep.subr.bf16.mxu0 %v365
  %469 = vmatpush1.bf16.msra.mxu0 %v364
  %470 = vmatprep.subr.bf16.mxu0 %v373
  %471 = vmatpush1.bf16.msra.mxu0 %v372
  %472 = vmatprep.subr.bf16.mxu0 %v381
  %473 = vmatpush1.bf16.msra.mxu0 %v380
  %474 = vmatprep.subr.bf16.mxu0 %v389
  %475 = vmatpush1.bf16.msra.mxu0 %v388
  %476 = vmatprep.subr.bf16.mxu0 0
  %477 = vmatpush1.bf16.msra.mxu0 0
  %478 = vmatprep.subr.bf16.mxu0 0
  %479 = vmatpush1.bf16.msra.mxu0 0
  %480 = vmatprep.subr.bf16.mxu0 0
  %481 = vmatpush1.bf16.msra.mxu0 0
  %482 = vmatprep.subr.bf16.mxu0 0
  %483 = vmatpush1.bf16.msra.mxu0 0
  %484 = vmatprep.subr.bf16.mxu0 0
  %485 = vmatpush1.bf16.msra.mxu0 0
  %486 = vmatprep.subr.bf16.mxu0 0
  %487 = vmatpush1.bf16.msra.mxu0 0
  %488 = vmatprep.subr.bf16.mxu0 0
  %489 = vmatpush1.bf16.msra.mxu0 0
  %490 = vmatprep.subr.bf16.mxu0 0
  %491 = vmatpush1.bf16.msra.mxu0 0
  %492 = vmatprep.mubr.bf16.mxu0 0
  %493 = vmatmul.mubr.bf16.gmra.mrb[0].mxu0 %v33
  %v494 = vpop.f32.mrb[0].mxu0
  %v495 = vadd.f32 %v103, %v494
  %v496 = vpop.f32.mrb[0].mxu0
  %v497 = vadd.f32 %v107, %v496
  %v498 = vpop.f32.mrb[0].mxu0
  %v499 = vpop.f32.mrb[0].mxu0
  %500 = vdwg.mxu0
  %501 = vmatprep.subr.bf16.mxu0 %v335
  %502 = vmatpush1.bf16.msra.mxu0 %v334
  %503 = vmatprep.subr.bf16.mxu0 %v343
  %504 = vmatpush1.bf16.msra.mxu0 %v342
  %505 = vmatprep.subr.bf16.mxu0 %v351
  %506 = vmatpush1.bf16.msra.mxu0 %v350
  %507 = vmatprep.subr.bf16.mxu0 %v359
  %508 = vmatpush1.bf16.msra.mxu0 %v358
  %509 = vmatprep.subr.bf16.mxu0 %v367
  %510 = vmatpush1.bf16.msra.mxu0 %v366
  %511 = vmatprep.subr.bf16.mxu0 %v375
  %512 = vmatpush1.bf16.msra.mxu0 %v374
  %513 = vmatprep.subr.bf16.mxu0 %v383
  %514 = vmatpush1.bf16.msra.mxu0 %v382
  %515 = vmatprep.subr.bf16.mxu0 %v391
  %516 = vmatpush1.bf16.msra.mxu0 %v390
  %517 = vmatprep.subr.bf16.mxu0 0
  %518 = vmatpush1.bf16.msra.mxu0 0
  %519 = vmatprep.subr.bf16.mxu0 0
  %520 = vmatpush1.bf16.msra.mxu0 0
  %521 = vmatprep.subr.bf16.mxu0 0
  %522 = vmatpush1.bf16.msra.mxu0 0
  %523 = vmatprep.subr.bf16.mxu0 0
  %524 = vmatpush1.bf16.msra.mxu0 0
  %525 = vmatprep.subr.bf16.mxu0 0
  %526 = vmatpush1.bf16.msra.mxu0 0
  %527 = vmatprep.subr.bf16.mxu0 0
  %528 = vmatpush1.bf16.msra.mxu0 0
  %529 = vmatprep.subr.bf16.mxu0 0
  %530 = vmatpush1.bf16.msra.mxu0 0
  %531 = vmatprep.subr.bf16.mxu0 0
  %532 = vmatpush1.bf16.msra.mxu0 0
  %533 = vmatprep.mubr.bf16.mxu0 0
  %534 = vmatmul.mubr.bf16.gmra.mrb[0].mxu0 %v33
  %v535 = vpop.f32.mrb[0].mxu0
  %v536 = vadd.f32 %v111, %v535
  %v537 = vpop.f32.mrb[0].mxu0
  %v538 = vadd.f32 %v115, %v537
  %v539 = vpop.f32.mrb[0].mxu0
  %v540 = vpop.f32.mrb[0].mxu0
  %541 = vdwg.mxu0
  %542 = vmatprep.subr.bf16.mxu0 %v337
  %543 = vmatpush1.bf16.msra.mxu0 %v336
  %544 = vmatprep.subr.bf16.mxu0 %v345
  %545 = vmatpush1.bf16.msra.mxu0 %v344
  %546 = vmatprep.subr.bf16.mxu0 %v353
  %547 = vmatpush1.bf16.msra.mxu0 %v352
  %548 = vmatprep.subr.bf16.mxu0 %v361
  %549 = vmatpush1.bf16.msra.mxu0 %v360
  %550 = vmatprep.subr.bf16.mxu0 %v369
  %551 = vmatpush1.bf16.msra.mxu0 %v368
  %552 = vmatprep.subr.bf16.mxu0 %v377
  %553 = vmatpush1.bf16.msra.mxu0 %v376
  %554 = vmatprep.subr.bf16.mxu0 %v385
  %555 = vmatpush1.bf16.msra.mxu0 %v384
  %556 = vmatprep.subr.bf16.mxu0 %v393
  %557 = vmatpush1.bf16.msra.mxu0 %v392
  %558 = vmatprep.subr.bf16.mxu0 0
  %559 = vmatpush1.bf16.msra.mxu0 0
  %560 = vmatprep.subr.bf16.mxu0 0
  %561 = vmatpush1.bf16.msra.mxu0 0
  %562 = vmatprep.subr.bf16.mxu0 0
  %563 = vmatpush1.bf16.msra.mxu0 0
  %564 = vmatprep.subr.bf16.mxu0 0
  %565 = vmatpush1.bf16.msra.mxu0 0
  %566 = vmatprep.subr.bf16.mxu0 0
  %567 = vmatpush1.bf16.msra.mxu0 0
  %568 = vmatprep.subr.bf16.mxu0 0
  %569 = vmatpush1.bf16.msra.mxu0 0
  %570 = vmatprep.subr.bf16.mxu0 0
  %571 = vmatpush1.bf16.msra.mxu0 0
  %572 = vmatprep.subr.bf16.mxu0 0
  %573 = vmatpush1.bf16.msra.mxu0 0
  %574 = vmatprep.mubr.bf16.mxu0 0
  %575 = vmatmul.mubr.bf16.gmra.mrb[0].mxu0 %v33
  %v576 = vpop.f32.mrb[0].mxu0
  %v577 = vadd.f32 %v119, %v576
  %v578 = vpop.f32.mrb[0].mxu0
  %v579 = vadd.f32 %v123, %v578
  %v580 = vpop.f32.mrb[0].mxu0
  %v581 = vpop.f32.mrb[0].mxu0
  %582 = vdwg.mxu0
  %583 = vmatprep.subr.bf16.mxu0 %v339
  %584 = vmatpush1.bf16.msra.mxu0 %v338
  %585 = vmatprep.subr.bf16.mxu0 %v347
  %586 = vmatpush1.bf16.msra.mxu0 %v346
  %587 = vmatprep.subr.bf16.mxu0 %v355
  %588 = vmatpush1.bf16.msra.mxu0 %v354
  %589 = vmatprep.subr.bf16.mxu0 %v363
  %590 = vmatpush1.bf16.msra.mxu0 %v362
  %591 = vmatprep.subr.bf16.mxu0 %v371
  %592 = vmatpush1.bf16.msra.mxu0 %v370
  %593 = vmatprep.subr.bf16.mxu0 %v379
  %594 = vmatpush1.bf16.msra.mxu0 %v378
  %595 = vmatprep.subr.bf16.mxu0 %v387
  %596 = vmatpush1.bf16.msra.mxu0 %v386
  %597 = vmatprep.subr.bf16.mxu0 %v395
  %598 = vmatpush1.bf16.msra.mxu0 %v394
  %599 = vmatprep.subr.bf16.mxu0 0
  %600 = vmatpush1.bf16.msra.mxu0 0
  %601 = vmatprep.subr.bf16.mxu0 0
  %602 = vmatpush1.bf16.msra.mxu0 0
  %603 = vmatprep.subr.bf16.mxu0 0
  %604 = vmatpush1.bf16.msra.mxu0 0
  %605 = vmatprep.subr.bf16.mxu0 0
  %606 = vmatpush1.bf16.msra.mxu0 0
  %607 = vmatprep.subr.bf16.mxu0 0
  %608 = vmatpush1.bf16.msra.mxu0 0
  %609 = vmatprep.subr.bf16.mxu0 0
  %610 = vmatpush1.bf16.msra.mxu0 0
  %611 = vmatprep.subr.bf16.mxu0 0
  %612 = vmatpush1.bf16.msra.mxu0 0
  %613 = vmatprep.subr.bf16.mxu0 0
  %614 = vmatpush1.bf16.msra.mxu0 0
  %615 = vmatprep.mubr.bf16.mxu0 0
  %616 = vmatmul.mubr.bf16.gmra.mrb[0].mxu0 %v33
  %v617 = vpop.f32.mrb[0].mxu0
  %v618 = vadd.f32 %v127, %v617
  %v619 = vpop.f32.mrb[0].mxu0
  %v620 = vadd.f32 %v131, %v619
  %v621 = vpop.f32.mrb[0].mxu0
  %v622 = vpop.f32.mrb[0].mxu0
  %623 = vdwg.mxu0
  %v624 = vmax.f32 %v495, 0.0
  %v625 = vmax.f32 %v497, 0.0
  %v626 = vmax.f32 %v536, 0.0
  %v627 = vmax.f32 %v538, 0.0
  %v628 = vmax.f32 %v577, 0.0
  %v629 = vmax.f32 %v579, 0.0
  %v630 = vmax.f32 %v618, 0.0
  %v631 = vmax.f32 %v620, 0.0
  %v632 = vld [vmem:[%s3] sm:$0xff]
  %v633 = vld [vmem:[%s3 + $0x8] sm:$0xff]
  %v634 = vld [vmem:[%s3 + $0x10] sm:$0xff]
  %v635 = vld [vmem:[%s3 + $0x18] sm:$0xff]
  %v636 = vld [vmem:[%s3 + $0x20] sm:$0xff]
  %v637 = vld [vmem:[%s3 + $0x28] sm:$0xff]
  %v638 = vld [vmem:[%s3 + $0x30] sm:$0xff]
  %v639 = vld [vmem:[%s3 + $0x38] sm:$0xff]
  %v640 = vld [vmem:[%s3 + $0x40] sm:$0xff]
  %v641 = vld [vmem:[%s3 + $0x48] sm:$0xff]
  %v642 = vld [vmem:[%s3 + $0x50] sm:$0xff]
  %v643 = vld [vmem:[%s3 + $0x58] sm:$0xff]
  %v644 = vld [vmem:[%s3 + $0x60] sm:$0xff]
  %v645 = vld [vmem:[%s3 + $0x68] sm:$0xff]
  %v646 = vld [vmem:[%s3 + $0x70] sm:$0xff]
  %v647 = vld [vmem:[%s3 + $0x78] sm:$0xff]
  %v648 = vld [vmem:[%s3 + $0x80] sm:$0xff]
  %v649 = vld [vmem:[%s3 + $0x88] sm:$0xff]
  %v650 = vld [vmem:[%s3 + $0x90] sm:$0xff]
  %v651 = vld [vmem:[%s3 + $0x98] sm:$0xff]
  %v652 = vld [vmem:[%s3 + $0xa0] sm:$0xff]
  %v653 = vld [vmem:[%s3 + $0xa8] sm:$0xff]
  %v654 = vld [vmem:[%s3 + $0xb0] sm:$0xff]
  %v655 = vld [vmem:[%s3 + $0xb8] sm:$0xff]
  %v656 = vld [vmem:[%s3 + $0xc0] sm:$0xff]
  %v657 = vld [vmem:[%s3 + $0xc8] sm:$0xff]
  %v658 = vld [vmem:[%s3 + $0xd0] sm:$0xff]
  %v659 = vld [vmem:[%s3 + $0xd8] sm:$0xff]
  %v660 = vld [vmem:[%s3 + $0xe0] sm:$0xff]
  %v661 = vld [vmem:[%s3 + $0xe8] sm:$0xff]
  %v662 = vld [vmem:[%s3 + $0xf0] sm:$0xff]
  %v663 = vld [vmem:[%s3 + $0xf8] sm:$0xff]
  %v664 = vld [vmem:[%s3 + $0x100] sm:$0xff]
  %v665 = vld [vmem:[%s3 + $0x108] sm:$0xff]
  %v666 = vld [vmem:[%s3 + $0x110] sm:$0xff]
  %v667 = vld [vmem:[%s3 + $0x118] sm:$0xff]
  %v668 = vld [vmem:[%s3 + $0x120] sm:$0xff]
  %v669 = vld [vmem:[%s3 + $0x128] sm:$0xff]
  %v670 = vld [vmem:[%s3 + $0x130] sm:$0xff]
  %v671 = vld [vmem:[%s3 + $0x138] sm:$0xff]
  %v672 = vld [vmem:[%s3 + $0x140] sm:$0xff]
  %v673 = vld [vmem:[%s3 + $0x148] sm:$0xff]
  %v674 = vld [vmem:[%s3 + $0x150] sm:$0xff]
  %v675 = vld [vmem:[%s3 + $0x158] sm:$0xff]
  %v676 = vld [vmem:[%s3 + $0x160] sm:$0xff]
  %v677 = vld [vmem:[%s3 + $0x168] sm:$0xff]
  %v678 = vld [vmem:[%s3 + $0x170] sm:$0xff]
  %v679 = vld [vmem:[%s3 + $0x178] sm:$0xff]
  %v680 = vld [vmem:[%s3 + $0x180] sm:$0xff]
  %v681 = vld [vmem:[%s3 + $0x188] sm:$0xff]
  %v682 = vld [vmem:[%s3 + $0x190] sm:$0xff]
  %v683 = vld [vmem:[%s3 + $0x198] sm:$0xff]
  %v684 = vld [vmem:[%s3 + $0x1a0] sm:$0xff]
  %v685 = vld [vmem:[%s3 + $0x1a8] sm:$0xff]
  %v686 = vld [vmem:[%s3 + $0x1b0] sm:$0xff]
  %v687 = vld [vmem:[%s3 + $0x1b8] sm:$0xff]
  %v688 = vld [vmem:[%s3 + $0x1c0] sm:$0xff]
  %v689 = vld [vmem:[%s3 + $0x1c8] sm:$0xff]
  %v690 = vld [vmem:[%s3 + $0x1d0] sm:$0xff]
  %v691 = vld [vmem:[%s3 + $0x1d8] sm:$0xff]
  %v692 = vld [vmem:[%s3 + $0x1e0] sm:$0xff]
  %v693 = vld [vmem:[%s3 + $0x1e8] sm:$0xff]
  %v694 = vld [vmem:[%s3 + $0x1f0] sm:$0xff]
  %v695 = vld [vmem:[%s3 + $0x1f8] sm:$0xff]
  %v696 = vld [vmem:[%s3 + $0x200] sm:$0xff]
  %v697 = vld [vmem:[%s3 + $0x208] sm:$0xff]
  %v698 = vld [vmem:[%s3 + $0x210] sm:$0xff]
  %v699 = vld [vmem:[%s3 + $0x218] sm:$0xff]
  %v700 = vld [vmem:[%s3 + $0x220] sm:$0xff]
  %v701 = vld [vmem:[%s3 + $0x228] sm:$0xff]
  %v702 = vld [vmem:[%s3 + $0x230] sm:$0xff]
  %v703 = vld [vmem:[%s3 + $0x238] sm:$0xff]
  %v704 = vld [vmem:[%s3 + $0x240] sm:$0xff]
  %v705 = vld [vmem:[%s3 + $0x248] sm:$0xff]
  %v706 = vld [vmem:[%s3 + $0x250] sm:$0xff]
  %v707 = vld [vmem:[%s3 + $0x258] sm:$0xff]
  %v708 = vld [vmem:[%s3 + $0x260] sm:$0xff]
  %v709 = vld [vmem:[%s3 + $0x268] sm:$0xff]
  %v710 = vld [vmem:[%s3 + $0x270] sm:$0xff]
  %v711 = vld [vmem:[%s3 + $0x278] sm:$0xff]
  %v712 = vld [vmem:[%s3 + $0x280] sm:$0xff]
  %v713 = vld [vmem:[%s3 + $0x288] sm:$0xff]
  %v714 = vld [vmem:[%s3 + $0x290] sm:$0xff]
  %v715 = vld [vmem:[%s3 + $0x298] sm:$0xff]
  %v716 = vld [vmem:[%s3 + $0x2a0] sm:$0xff]
  %v717 = vld [vmem:[%s3 + $0x2a8] sm:$0xff]
  %v718 = vld [vmem:[%s3 + $0x2b0] sm:$0xff]
  %v719 = vld [vmem:[%s3 + $0x2b8] sm:$0xff]
  %v720 = vld [vmem:[%s3 + $0x2c0] sm:$0xff]
  %v721 = vld [vmem:[%s3 + $0x2c8] sm:$0xff]
  %v722 = vld [vmem:[%s3 + $0x2d0] sm:$0xff]
  %v723 = vld [vmem:[%s3 + $0x2d8] sm:$0xff]
  %v724 = vld [vmem:[%s3 + $0x2e0] sm:$0xff]
  %v725 = vld [vmem:[%s3 + $0x2e8] sm:$0xff]
  %v726 = vld [vmem:[%s3 + $0x2f0] sm:$0xff]
  %v727 = vld [vmem:[%s3 + $0x2f8] sm:$0xff]
  %v728 = vld [vmem:[%s3 + $0x300] sm:$0xff]
  %v729 = vld [vmem:[%s3 + $0x308] sm:$0xff]
  %v730 = vld [vmem:[%s3 + $0x310] sm:$0xff]
  %v731 = vld [vmem:[%s3 + $0x318] sm:$0xff]
  %v732 = vld [vmem:[%s3 + $0x320] sm:$0xff]
  %v733 = vld [vmem:[%s3 + $0x328] sm:$0xff]
  %v734 = vld [vmem:[%s3 + $0x330] sm:$0xff]
  %v735 = vld [vmem:[%s3 + $0x338] sm:$0xff]
  %v736 = vld [vmem:[%s3 + $0x340] sm:$0xff]
  %v737 = vld [vmem:[%s3 + $0x348] sm:$0xff]
  %v738 = vld [vmem:[%s3 + $0x350] sm:$0xff]
  %v739 = vld [vmem:[%s3 + $0x358] sm:$0xff]
  %v740 = vld [vmem:[%s3 + $0x360] sm:$0xff]
  %v741 = vld [vmem:[%s3 + $0x368] sm:$0xff]
  %v742 = vld [vmem:[%s3 + $0x370] sm:$0xff]
  %v743 = vld [vmem:[%s3 + $0x378] sm:$0xff]
  %v744 = vld [vmem:[%s3 + $0x380] sm:$0xff]
  %v745 = vld [vmem:[%s3 + $0x388] sm:$0xff]
  %v746 = vld [vmem:[%s3 + $0x390] sm:$0xff]
  %v747 = vld [vmem:[%s3 + $0x398] sm:$0xff]
  %v748 = vld [vmem:[%s3 + $0x3a0] sm:$0xff]
  %v749 = vld [vmem:[%s3 + $0x3a8] sm:$0xff]
  %v750 = vld [vmem:[%s3 + $0x3b0] sm:$0xff]
  %v751 = vld [vmem:[%s3 + $0x3b8] sm:$0xff]
  %v752 = vld [vmem:[%s3 + $0x3c0] sm:$0xff]
  %v753 = vld [vmem:[%s3 + $0x3c8] sm:$0xff]
  %v754 = vld [vmem:[%s3 + $0x3d0] sm:$0xff]
  %v755 = vld [vmem:[%s3 + $0x3d8] sm:$0xff]
  %v756 = vld [vmem:[%s3 + $0x3e0] sm:$0xff]
  %v757 = vld [vmem:[%s3 + $0x3e8] sm:$0xff]
  %v758 = vld [vmem:[%s3 + $0x3f0] sm:$0xff]
  %v759 = vld [vmem:[%s3 + $0x3f8] sm:$0xff]
  %s760 = sld [smem:[#allocation2]]
  %v761 = vstv %s760
  %762 = vmatprep.subr.mxu0 0.0
  %763 = vmatpush1.msra.mxu0 %v632
  %764 = vmatprep.subr.mxu0 0.0
  %765 = vmatpush1.msra.mxu0 %v633
  %766 = vmatprep.subr.mxu0 0.0
  %767 = vmatpush1.msra.mxu0 %v634
  %768 = vmatprep.subr.mxu0 0.0
  %769 = vmatpush1.msra.mxu0 %v635
  %770 = vmatprep.subr.mxu0 0.0
  %771 = vmatpush1.msra.mxu0 %v636
  %772 = vmatprep.subr.mxu0 0.0
  %773 = vmatpush1.msra.mxu0 %v637
  %774 = vmatprep.subr.mxu0 0.0
  %775 = vmatpush1.msra.mxu0 %v638
  %776 = vmatprep.subr.mxu0 0.0
  %777 = vmatpush1.msra.mxu0 %v639
  %778 = vmatprep.subr.mxu0 0.0
  %779 = vmatpush1.msra.mxu0 %v640
  %780 = vmatprep.subr.mxu0 0.0
  %781 = vmatpush1.msra.mxu0 %v641
  %782 = vmatprep.subr.mxu0 0.0
  %783 = vmatpush1.msra.mxu0 %v642
  %784 = vmatprep.subr.mxu0 0.0
  %785 = vmatpush1.msra.mxu0 %v643
  %786 = vmatprep.subr.mxu0 0.0
  %787 = vmatpush1.msra.mxu0 %v644
  %788 = vmatprep.subr.mxu0 0.0
  %789 = vmatpush1.msra.mxu0 %v645
  %790 = vmatprep.subr.mxu0 0.0
  %791 = vmatpush1.msra.mxu0 %v646
  %792 = vmatprep.subr.mxu0 0.0
  %793 = vmatpush1.msra.mxu0 %v647
  %794 = vmatprep.subr.mxu0 0.0
  %795 = vmatpush1.msra.mxu0 %v648
  %796 = vmatprep.subr.mxu0 0.0
  %797 = vmatpush1.msra.mxu0 %v649
  %798 = vmatprep.subr.mxu0 0.0
  %799 = vmatpush1.msra.mxu0 %v650
  %800 = vmatprep.subr.mxu0 0.0
  %801 = vmatpush1.msra.mxu0 %v651
  %802 = vmatprep.subr.mxu0 0.0
  %803 = vmatpush1.msra.mxu0 %v652
  %804 = vmatprep.subr.mxu0 0.0
  %805 = vmatpush1.msra.mxu0 %v653
  %806 = vmatprep.subr.mxu0 0.0
  %807 = vmatpush1.msra.mxu0 %v654
  %808 = vmatprep.subr.mxu0 0.0
  %809 = vmatpush1.msra.mxu0 %v655
  %810 = vmatprep.subr.mxu0 0.0
  %811 = vmatpush1.msra.mxu0 %v656
  %812 = vmatprep.subr.mxu0 0.0
  %813 = vmatpush1.msra.mxu0 %v657
  %814 = vmatprep.subr.mxu0 0.0
  %815 = vmatpush1.msra.mxu0 %v658
  %816 = vmatprep.subr.mxu0 0.0
  %817 = vmatpush1.msra.mxu0 %v659
  %818 = vmatprep.subr.mxu0 0.0
  %819 = vmatpush1.msra.mxu0 %v660
  %820 = vmatprep.subr.mxu0 0.0
  %821 = vmatpush1.msra.mxu0 %v661
  %822 = vmatprep.subr.mxu0 0.0
  %823 = vmatpush1.msra.mxu0 %v662
  %824 = vmatprep.subr.mxu0 0.0
  %825 = vmatpush1.msra.mxu0 %v663
  %826 = vmatprep.mubr.f32.mxu0 %v625
  %827 = vmatmul.mubr.f32.gmra.mrb[0].mxu0 %v624
  %v828 = vpop.f32.mrb[0].mxu0
  %v829 = vadd.f32 %v761, %v828
  %v830 = vpop.f32.mrb[0].mxu0
  %831 = vdwg.mxu0
  %832 = vmatprep.subr.mxu0 0.0
  %833 = vmatpush1.msra.mxu0 %v664
  %834 = vmatprep.subr.mxu0 0.0
  %835 = vmatpush1.msra.mxu0 %v665
  %836 = vmatprep.subr.mxu0 0.0
  %837 = vmatpush1.msra.mxu0 %v666
  %838 = vmatprep.subr.mxu0 0.0
  %839 = vmatpush1.msra.mxu0 %v667
  %840 = vmatprep.subr.mxu0 0.0
  %841 = vmatpush1.msra.mxu0 %v668
  %842 = vmatprep.subr.mxu0 0.0
  %843 = vmatpush1.msra.mxu0 %v669
  %844 = vmatprep.subr.mxu0 0.0
  %845 = vmatpush1.msra.mxu0 %v670
  %846 = vmatprep.subr.mxu0 0.0
  %847 = vmatpush1.msra.mxu0 %v671
  %848 = vmatprep.subr.mxu0 0.0
  %849 = vmatpush1.msra.mxu0 %v672
  %850 = vmatprep.subr.mxu0 0.0
  %851 = vmatpush1.msra.mxu0 %v673
  %852 = vmatprep.subr.mxu0 0.0
  %853 = vmatpush1.msra.mxu0 %v674
  %854 = vmatprep.subr.mxu0 0.0
  %855 = vmatpush1.msra.mxu0 %v675
  %856 = vmatprep.subr.mxu0 0.0
  %857 = vmatpush1.msra.mxu0 %v676
  %858 = vmatprep.subr.mxu0 0.0
  %859 = vmatpush1.msra.mxu0 %v677
  %860 = vmatprep.subr.mxu0 0.0
  %861 = vmatpush1.msra.mxu0 %v678
  %862 = vmatprep.subr.mxu0 0.0
  %863 = vmatpush1.msra.mxu0 %v679
  %864 = vmatprep.subr.mxu0 0.0
  %865 = vmatpush1.msra.mxu0 %v680
  %866 = vmatprep.subr.mxu0 0.0
  %867 = vmatpush1.msra.mxu0 %v681
  %868 = vmatprep.subr.mxu0 0.0
  %869 = vmatpush1.msra.mxu0 %v682
  %870 = vmatprep.subr.mxu0 0.0
  %871 = vmatpush1.msra.mxu0 %v683
  %872 = vmatprep.subr.mxu0 0.0
  %873 = vmatpush1.msra.mxu0 %v684
  %874 = vmatprep.subr.mxu0 0.0
  %875 = vmatpush1.msra.mxu0 %v685
  %876 = vmatprep.subr.mxu0 0.0
  %877 = vmatpush1.msra.mxu0 %v686
  %878 = vmatprep.subr.mxu0 0.0
  %879 = vmatpush1.msra.mxu0 %v687
  %880 = vmatprep.subr.mxu0 0.0
  %881 = vmatpush1.msra.mxu0 %v688
  %882 = vmatprep.subr.mxu0 0.0
  %883 = vmatpush1.msra.mxu0 %v689
  %884 = vmatprep.subr.mxu0 0.0
  %885 = vmatpush1.msra.mxu0 %v690
  %886 = vmatprep.subr.mxu0 0.0
  %887 = vmatpush1.msra.mxu0 %v691
  %888 = vmatprep.subr.mxu0 0.0
  %889 = vmatpush1.msra.mxu0 %v692
  %890 = vmatprep.subr.mxu0 0.0
  %891 = vmatpush1.msra.mxu0 %v693
  %892 = vmatprep.subr.mxu0 0.0
  %893 = vmatpush1.msra.mxu0 %v694
  %894 = vmatprep.subr.mxu0 0.0
  %895 = vmatpush1.msra.mxu0 %v695
  %896 = vmatprep.mubr.f32.mxu0 %v627
  %897 = vmatmul.mubr.f32.gmra.mrb[0].mxu0 %v626
  %v898 = vpop.f32.mrb[0].mxu0
  %v899 = vadd.f32 %v829, %v898
  %v900 = vpop.f32.mrb[0].mxu0
  %901 = vdwg.mxu0
  %902 = vmatprep.subr.mxu0 0.0
  %903 = vmatpush1.msra.mxu0 %v696
  %904 = vmatprep.subr.mxu0 0.0
  %905 = vmatpush1.msra.mxu0 %v697
  %906 = vmatprep.subr.mxu0 0.0
  %907 = vmatpush1.msra.mxu0 %v698
  %908 = vmatprep.subr.mxu0 0.0
  %909 = vmatpush1.msra.mxu0 %v699
  %910 = vmatprep.subr.mxu0 0.0
  %911 = vmatpush1.msra.mxu0 %v700
  %912 = vmatprep.subr.mxu0 0.0
  %913 = vmatpush1.msra.mxu0 %v701
  %914 = vmatprep.subr.mxu0 0.0
  %915 = vmatpush1.msra.mxu0 %v702
  %916 = vmatprep.subr.mxu0 0.0
  %917 = vmatpush1.msra.mxu0 %v703
  %918 = vmatprep.subr.mxu0 0.0
  %919 = vmatpush1.msra.mxu0 %v704
  %920 = vmatprep.subr.mxu0 0.0
  %921 = vmatpush1.msra.mxu0 %v705
  %922 = vmatprep.subr.mxu0 0.0
  %923 = vmatpush1.msra.mxu0 %v706
  %924 = vmatprep.subr.mxu0 0.0
  %925 = vmatpush1.msra.mxu0 %v707
  %926 = vmatprep.subr.mxu0 0.0
  %927 = vmatpush1.msra.mxu0 %v708
  %928 = vmatprep.subr.mxu0 0.0
  %929 = vmatpush1.msra.mxu0 %v709
  %930 = vmatprep.subr.mxu0 0.0
  %931 = vmatpush1.msra.mxu0 %v710
  %932 = vmatprep.subr.mxu0 0.0
  %933 = vmatpush1.msra.mxu0 %v711
  %934 = vmatprep.subr.mxu0 0.0
  %935 = vmatpush1.msra.mxu0 %v712
  %936 = vmatprep.subr.mxu0 0.0
  %937 = vmatpush1.msra.mxu0 %v713
  %938 = vmatprep.subr.mxu0 0.0
  %939 = vmatpush1.msra.mxu0 %v714
  %940 = vmatprep.subr.mxu0 0.0
  %941 = vmatpush1.msra.mxu0 %v715
  %942 = vmatprep.subr.mxu0 0.0
  %943 = vmatpush1.msra.mxu0 %v716
  %944 = vmatprep.subr.mxu0 0.0
  %945 = vmatpush1.msra.mxu0 %v717
  %946 = vmatprep.subr.mxu0 0.0
  %947 = vmatpush1.msra.mxu0 %v718
  %948 = vmatprep.subr.mxu0 0.0
  %949 = vmatpush1.msra.mxu0 %v719
  %950 = vmatprep.subr.mxu0 0.0
  %951 = vmatpush1.msra.mxu0 %v720
  %952 = vmatprep.subr.mxu0 0.0
  %953 = vmatpush1.msra.mxu0 %v721
  %954 = vmatprep.subr.mxu0 0.0
  %955 = vmatpush1.msra.mxu0 %v722
  %956 = vmatprep.subr.mxu0 0.0
  %957 = vmatpush1.msra.mxu0 %v723
  %958 = vmatprep.subr.mxu0 0.0
  %959 = vmatpush1.msra.mxu0 %v724
  %960 = vmatprep.subr.mxu0 0.0
  %961 = vmatpush1.msra.mxu0 %v725
  %962 = vmatprep.subr.mxu0 0.0
  %963 = vmatpush1.msra.mxu0 %v726
  %964 = vmatprep.subr.mxu0 0.0
  %965 = vmatpush1.msra.mxu0 %v727
  %966 = vmatprep.mubr.f32.mxu0 %v629
  %967 = vmatmul.mubr.f32.gmra.mrb[0].mxu0 %v628
  %v968 = vpop.f32.mrb[0].mxu0
  %v969 = vadd.f32 %v899, %v968
  %v970 = vpop.f32.mrb[0].mxu0
  %971 = vdwg.mxu0
  %972 = vmatprep.subr.mxu0 0.0
  %973 = vmatpush1.msra.mxu0 %v728
  %974 = vmatprep.subr.mxu0 0.0
  %975 = vmatpush1.msra.mxu0 %v729
  %976 = vmatprep.subr.mxu0 0.0
  %977 = vmatpush1.msra.mxu0 %v730
  %978 = vmatprep.subr.mxu0 0.0
  %979 = vmatpush1.msra.mxu0 %v731
  %980 = vmatprep.subr.mxu0 0.0
  %981 = vmatpush1.msra.mxu0 %v732
  %982 = vmatprep.subr.mxu0 0.0
  %983 = vmatpush1.msra.mxu0 %v733
  %984 = vmatprep.subr.mxu0 0.0
  %985 = vmatpush1.msra.mxu0 %v734
  %986 = vmatprep.subr.mxu0 0.0
  %987 = vmatpush1.msra.mxu0 %v735
  %988 = vmatprep.subr.mxu0 0.0
  %989 = vmatpush1.msra.mxu0 %v736
  %990 = vmatprep.subr.mxu0 0.0
  %991 = vmatpush1.msra.mxu0 %v737
  %992 = vmatprep.subr.mxu0 0.0
  %993 = vmatpush1.msra.mxu0 %v738
  %994 = vmatprep.subr.mxu0 0.0
  %995 = vmatpush1.msra.mxu0 %v739
  %996 = vmatprep.subr.mxu0 0.0
  %997 = vmatpush1.msra.mxu0 %v740
  %998 = vmatprep.subr.mxu0 0.0
  %999 = vmatpush1.msra.mxu0 %v741
  %1000 = vmatprep.subr.mxu0 0.0
  %1001 = vmatpush1.msra.mxu0 %v742
  %1002 = vmatprep.subr.mxu0 0.0
  %1003 = vmatpush1.msra.mxu0 %v743
  %1004 = vmatprep.subr.mxu0 0.0
  %1005 = vmatpush1.msra.mxu0 %v744
  %1006 = vmatprep.subr.mxu0 0.0
  %1007 = vmatpush1.msra.mxu0 %v745
  %1008 = vmatprep.subr.mxu0 0.0
  %1009 = vmatpush1.msra.mxu0 %v746
  %1010 = vmatprep.subr.mxu0 0.0
  %1011 = vmatpush1.msra.mxu0 %v747
  %1012 = vmatprep.subr.mxu0 0.0
  %1013 = vmatpush1.msra.mxu0 %v748
  %1014 = vmatprep.subr.mxu0 0.0
  %1015 = vmatpush1.msra.mxu0 %v749
  %1016 = vmatprep.subr.mxu0 0.0
  %1017 = vmatpush1.msra.mxu0 %v750
  %1018 = vmatprep.subr.mxu0 0.0
  %1019 = vmatpush1.msra.mxu0 %v751
  %1020 = vmatprep.subr.mxu0 0.0
  %1021 = vmatpush1.msra.mxu0 %v752
  %1022 = vmatprep.subr.mxu0 0.0
  %1023 = vmatpush1.msra.mxu0 %v753
  %1024 = vmatprep.subr.mxu0 0.0
  %1025 = vmatpush1.msra.mxu0 %v754
  %1026 = vmatprep.subr.mxu0 0.0
  %1027 = vmatpush1.msra.mxu0 %v755
  %1028 = vmatprep.subr.mxu0 0.0
  %1029 = vmatpush1.msra.mxu0 %v756
  %1030 = vmatprep.subr.mxu0 0.0
  %1031 = vmatpush1.msra.mxu0 %v757
  %1032 = vmatprep.subr.mxu0 0.0
  %1033 = vmatpush1.msra.mxu0 %v758
  %1034 = vmatprep.subr.mxu0 0.0
  %1035 = vmatpush1.msra.mxu0 %v759
  %1036 = vmatprep.mubr.f32.mxu0 %v631
  %1037 = vmatmul.mubr.f32.gmra.mrb[0].mxu0 %v630
  %v1038 = vpop.f32.mrb[0].mxu0
  %v1039 = vadd.f32 %v969, %v1038
  %v1040 = vpop.f32.mrb[0].mxu0
  %1041 = vdwg.mxu0
  %vm1042 = vcmp.gt.f32.partialorder %v1039, 0.0
  %v1043 = vmul.f32 %v1039, 0.01
  %v1044 = vsel %vm1042, %v1039, %v1043
  %1046 = vrot.lane.b32.xlu0 %v1044, 120
  %v1047 = vpop.permute.xlu0 %1046
  %v1049 = vmax.f32 %v1044, %v1047
  %1050 = vrot.lane.b32.xlu0 %v1044, 112
  %v1051 = vpop.permute.xlu0 %1050
  %v1053 = vmax.f32 %v1049, %v1051
  %1054 = vrot.lane.b32.xlu0 %v1044, 104
  %v1055 = vpop.permute.xlu0 %1054
  %v1057 = vmax.f32 %v1053, %v1055
  %v1058 = vsub.f32 %v1044, %v1057
  %v1059 = vmul.f32 %v1058, 1.442695
  %v1060 = vpow.pop %v1059
  %1062 = vrot.lane.b32.xlu0 %v1057, 8
  %v1063 = vpop.permute.xlu0 %1062
  %v1065 = vsub.f32 %v1044, %v1063
  %v1066 = vmul.f32 %v1065, 1.442695
  %v1067 = vpow.pop %v1066
  %1068 = vrot.lane.b32.xlu0 %v1057, 16
  %v1069 = vpop.permute.xlu0 %1068
  %v1071 = vsub.f32 %v1044, %v1069
  %v1072 = vmul.f32 %v1071, 1.442695
  %v1073 = vpow.pop %v1072
  %1074 = vrot.lane.b32.xlu0 %v1057, 24
  %v1075 = vpop.permute.xlu0 %1074
  %v1077 = vsub.f32 %v1044, %v1075
  %v1078 = vmul.f32 %v1077, 1.442695
  %v1079 = vpow.pop %v1078
  %1081 = vrot.lane.b32.xlu0 %v1067, 120
  %v1082 = vpop.permute.xlu0 %1081
  %v1084 = vadd.f32 %v1060, %v1082
  %1086 = vrot.lane.b32.xlu0 %v1073, 112
  %v1087 = vpop.permute.xlu0 %1086
  %v1089 = vadd.f32 %v1084, %v1087
  %1091 = vrot.lane.b32.xlu0 %v1079, 104
  %v1092 = vpop.permute.xlu0 %1091
  %v1094 = vadd.f32 %v1089, %v1092
  %v1095 = vrcp.pop %v1094
  %v1096 = vmul.f32 %v1060, %v1095
  %1098 = vrot.lane.b32.xlu0 %v1095, 8
  %v1099 = vpop.permute.xlu0 %1098
  %v1101 = vmul.f32 %v1067, %v1099
  %1102 = vrot.lane.b32.xlu0 %v1095, 16
  %v1103 = vpop.permute.xlu0 %1102
  %v1105 = vmul.f32 %v1073, %v1103
  %1106 = vrot.lane.b32.xlu0 %v1095, 24
  %v1107 = vpop.permute.xlu0 %1106
  %v1109 = vmul.f32 %v1079, %v1107
  %vm1110 = vcmask 64512
  %v1111 = vsel %vm1110, %v1096, %v1101
  %vm1112 = vcmask 130048
  %v1113 = vsel %vm1112, %v1111, %v1105
  %vm1114 = vcmask 195584
  %v1115 = vsel %vm1114, %v1113, %v1109
  %v1116 = vld [vmem:[%s4] sm:$0xff]
  %v1117 = vld [vmem:[%s4 + $0x8] sm:$0xff]
  %v1118 = vld [vmem:[%s4 + $0x10] sm:$0xff]
  %v1119 = vld [vmem:[%s4 + $0x18] sm:$0xff]
  %v1120 = vld [vmem:[%s4 + $0x20] sm:$0xff]
  %v1121 = vld [vmem:[%s4 + $0x28] sm:$0xff]
  %v1122 = vld [vmem:[%s4 + $0x30] sm:$0xff]
  %v1123 = vld [vmem:[%s4 + $0x38] sm:$0xff]
  %v1124 = vld [vmem:[%s4 + $0x40] sm:$0xff]
  %v1125 = vld [vmem:[%s4 + $0x48] sm:$0xff]
  %v1126 = vld [vmem:[%s4 + $0x50] sm:$0xff]
  %v1127 = vld [vmem:[%s4 + $0x58] sm:$0xff]
  %v1128 = vld [vmem:[%s4 + $0x60] sm:$0xff]
  %v1129 = vld [vmem:[%s4 + $0x68] sm:$0xff]
  %v1130 = vld [vmem:[%s4 + $0x70] sm:$0xff]
  %v1131 = vld [vmem:[%s4 + $0x78] sm:$0xff]
  %v1132 = vld [vmem:[%s4 + $0x80] sm:$0xff]
  %v1133 = vld [vmem:[%s4 + $0x88] sm:$0xff]
  %v1134 = vld [vmem:[%s4 + $0x90] sm:$0xff]
  %v1135 = vld [vmem:[%s4 + $0x98] sm:$0xff]
  %v1136 = vld [vmem:[%s4 + $0xa0] sm:$0xff]
  %v1137 = vld [vmem:[%s4 + $0xa8] sm:$0xff]
  %v1138 = vld [vmem:[%s4 + $0xb0] sm:$0xff]
  %v1139 = vld [vmem:[%s4 + $0xb8] sm:$0xff]
  %v1140 = vld [vmem:[%s4 + $0xc0] sm:$0xff]
  %v1141 = vld [vmem:[%s4 + $0xc8] sm:$0xff]
  %v1142 = vld [vmem:[%s4 + $0xd0] sm:$0xff]
  %v1143 = vld [vmem:[%s4 + $0xd8] sm:$0xff]
  %v1144 = vld [vmem:[%s4 + $0xe0] sm:$0xff]
  %v1145 = vld [vmem:[%s4 + $0xe8] sm:$0xff]
  %v1146 = vld [vmem:[%s4 + $0xf0] sm:$0xff]
  %v1147 = vld [vmem:[%s4 + $0xf8] sm:$0xff]
  %vm1148 = vcmask 261120
  %v1150 = vsel %vm1148, %v1115, 0
  %1152 = vmatprep.subr.mxu0 %v1117
  %1153 = vmatpush1.msra.mxu0 %v1116
  %1154 = vmatprep.subr.mxu0 %v1125
  %1155 = vmatpush1.msra.mxu0 %v1124
  %1156 = vmatprep.subr.mxu0 %v1133
  %1157 = vmatpush1.msra.mxu0 %v1132
  %1158 = vmatprep.subr.mxu0 %v1141
  %1159 = vmatpush1.msra.mxu0 %v1140
  %1160 = vmatprep.subr.mxu0 0.0
  %1161 = vmatpush1.msra.mxu0 0.0
  %1162 = vmatprep.subr.mxu0 0.0
  %1163 = vmatpush1.msra.mxu0 0.0
  %1164 = vmatprep.subr.mxu0 0.0
  %1165 = vmatpush1.msra.mxu0 0.0
  %1166 = vmatprep.subr.mxu0 0.0
  %1167 = vmatpush1.msra.mxu0 0.0
  %1168 = vmatprep.subr.mxu0 0.0
  %1169 = vmatpush1.msra.mxu0 0.0
  %1170 = vmatprep.subr.mxu0 0.0
  %1171 = vmatpush1.msra.mxu0 0.0
  %1172 = vmatprep.subr.mxu0 0.0
  %1173 = vmatpush1.msra.mxu0 0.0
  %1174 = vmatprep.subr.mxu0 0.0
  %1175 = vmatpush1.msra.mxu0 0.0
  %1176 = vmatprep.subr.mxu0 0.0
  %1177 = vmatpush1.msra.mxu0 0.0
  %1178 = vmatprep.subr.mxu0 0.0
  %1179 = vmatpush1.msra.mxu0 0.0
  %1180 = vmatprep.subr.mxu0 0.0
  %1181 = vmatpush1.msra.mxu0 0.0
  %1182 = vmatprep.subr.mxu0 0.0
  %1183 = vmatpush1.msra.mxu0 0.0
  %1184 = vmatprep.subr.mxu0 0.0
  %1185 = vmatpush1.msra.mxu0 0.0
  %1186 = vmatprep.subr.mxu0 0.0
  %1187 = vmatpush1.msra.mxu0 0.0
  %1188 = vmatprep.subr.mxu0 0.0
  %1189 = vmatpush1.msra.mxu0 0.0
  %1190 = vmatprep.subr.mxu0 0.0
  %1191 = vmatpush1.msra.mxu0 0.0
  %1192 = vmatprep.subr.mxu0 0.0
  %1193 = vmatpush1.msra.mxu0 0.0
  %1194 = vmatprep.subr.mxu0 0.0
  %1195 = vmatpush1.msra.mxu0 0.0
  %1196 = vmatprep.subr.mxu0 0.0
  %1197 = vmatpush1.msra.mxu0 0.0
  %1198 = vmatprep.subr.mxu0 0.0
  %1199 = vmatpush1.msra.mxu0 0.0
  %1200 = vmatprep.subr.mxu0 0.0
  %1201 = vmatpush1.msra.mxu0 0.0
  %1202 = vmatprep.subr.mxu0 0.0
  %1203 = vmatpush1.msra.mxu0 0.0
  %1204 = vmatprep.subr.mxu0 0.0
  %1205 = vmatpush1.msra.mxu0 0.0
  %1206 = vmatprep.subr.mxu0 0.0
  %1207 = vmatpush1.msra.mxu0 0.0
  %1208 = vmatprep.subr.mxu0 0.0
  %1209 = vmatpush1.msra.mxu0 0.0
  %1210 = vmatprep.subr.mxu0 0.0
  %1211 = vmatpush1.msra.mxu0 0.0
  %1212 = vmatprep.subr.mxu0 0.0
  %1213 = vmatpush1.msra.mxu0 0.0
  %1214 = vmatprep.subr.mxu0 0.0
  %1215 = vmatpush1.msra.mxu0 0.0
  %1216 = vmatprep.mubr.f32.mxu0 0.0
  %1217 = vmatmul.mubr.f32.gmra.mrb[0].mxu0 %v1150
  %v1218 = vpop.f32.mrb[0].mxu0
  %v1219 = vadd.f32 0.0, %v1218
  %v1220 = vpop.f32.mrb[0].mxu0
  %v1221 = vadd.f32 0.0, %v1220
  %1222 = vdwg.mxu0
  %1223 = vmatprep.subr.mxu0 %v1119
  %1224 = vmatpush1.msra.mxu0 %v1118
  %1225 = vmatprep.subr.mxu0 %v1127
  %1226 = vmatpush1.msra.mxu0 %v1126
  %1227 = vmatprep.subr.mxu0 %v1135
  %1228 = vmatpush1.msra.mxu0 %v1134
  %1229 = vmatprep.subr.mxu0 %v1143
  %1230 = vmatpush1.msra.mxu0 %v1142
  %1231 = vmatprep.subr.mxu0 0.0
  %1232 = vmatpush1.msra.mxu0 0.0
  %1233 = vmatprep.subr.mxu0 0.0
  %1234 = vmatpush1.msra.mxu0 0.0
  %1235 = vmatprep.subr.mxu0 0.0
  %1236 = vmatpush1.msra.mxu0 0.0
  %1237 = vmatprep.subr.mxu0 0.0
  %1238 = vmatpush1.msra.mxu0 0.0
  %1239 = vmatprep.subr.mxu0 0.0
  %1240 = vmatpush1.msra.mxu0 0.0
  %1241 = vmatprep.subr.mxu0 0.0
  %1242 = vmatpush1.msra.mxu0 0.0
  %1243 = vmatprep.subr.mxu0 0.0
  %1244 = vmatpush1.msra.mxu0 0.0
  %1245 = vmatprep.subr.mxu0 0.0
  %1246 = vmatpush1.msra.mxu0 0.0
  %1247 = vmatprep.subr.mxu0 0.0
  %1248 = vmatpush1.msra.mxu0 0.0
  %1249 = vmatprep.subr.mxu0 0.0
  %1250 = vmatpush1.msra.mxu0 0.0
  %1251 = vmatprep.subr.mxu0 0.0
  %1252 = vmatpush1.msra.mxu0 0.0
  %1253 = vmatprep.subr.mxu0 0.0
  %1254 = vmatpush1.msra.mxu0 0.0
  %1255 = vmatprep.subr.mxu0 0.0
  %1256 = vmatpush1.msra.mxu0 0.0
  %1257 = vmatprep.subr.mxu0 0.0
  %1258 = vmatpush1.msra.mxu0 0.0
  %1259 = vmatprep.subr.mxu0 0.0
  %1260 = vmatpush1.msra.mxu0 0.0
  %1261 = vmatprep.subr.mxu0 0.0
  %1262 = vmatpush1.msra.mxu0 0.0
  %1263 = vmatprep.subr.mxu0 0.0
  %1264 = vmatpush1.msra.mxu0 0.0
  %1265 = vmatprep.subr.mxu0 0.0
  %1266 = vmatpush1.msra.mxu0 0.0
  %1267 = vmatprep.subr.mxu0 0.0
  %1268 = vmatpush1.msra.mxu0 0.0
  %1269 = vmatprep.subr.mxu0 0.0
  %1270 = vmatpush1.msra.mxu0 0.0
  %1271 = vmatprep.subr.mxu0 0.0
  %1272 = vmatpush1.msra.mxu0 0.0
  %1273 = vmatprep.subr.mxu0 0.0
  %1274 = vmatpush1.msra.mxu0 0.0
  %1275 = vmatprep.subr.mxu0 0.0
  %1276 = vmatpush1.msra.mxu0 0.0
  %1277 = vmatprep.subr.mxu0 0.0
  %1278 = vmatpush1.msra.mxu0 0.0
  %1279 = vmatprep.subr.mxu0 0.0
  %1280 = vmatpush1.msra.mxu0 0.0
  %1281 = vmatprep.subr.mxu0 0.0
  %1282 = vmatpush1.msra.mxu0 0.0
  %1283 = vmatprep.subr.mxu0 0.0
  %1284 = vmatpush1.msra.mxu0 0.0
  %1285 = vmatprep.subr.mxu0 0.0
  %1286 = vmatpush1.msra.mxu0 0.0
  %1287 = vmatprep.mubr.f32.mxu0 0.0
  %1288 = vmatmul.mubr.f32.gmra.mrb[0].mxu0 %v1150
  %v1289 = vpop.f32.mrb[0].mxu0
  %v1290 = vadd.f32 0.0, %v1289
  %v1291 = vpop.f32.mrb[0].mxu0
  %v1292 = vadd.f32 0.0, %v1291
  %1293 = vdwg.mxu0
  %1294 = vmatprep.subr.mxu0 %v1121
  %1295 = vmatpush1.msra.mxu0 %v1120
  %1296 = vmatprep.subr.mxu0 %v1129
  %1297 = vmatpush1.msra.mxu0 %v1128
  %1298 = vmatprep.subr.mxu0 %v1137
  %1299 = vmatpush1.msra.mxu0 %v1136
  %1300 = vmatprep.subr.mxu0 %v1145
  %1301 = vmatpush1.msra.mxu0 %v1144
  %1302 = vmatprep.subr.mxu0 0.0
  %1303 = vmatpush1.msra.mxu0 0.0
  %1304 = vmatprep.subr.mxu0 0.0
  %1305 = vmatpush1.msra.mxu0 0.0
  %1306 = vmatprep.subr.mxu0 0.0
  %1307 = vmatpush1.msra.mxu0 0.0
  %1308 = vmatprep.subr.mxu0 0.0
  %1309 = vmatpush1.msra.mxu0 0.0
  %1310 = vmatprep.subr.mxu0 0.0
  %1311 = vmatpush1.msra.mxu0 0.0
  %1312 = vmatprep.subr.mxu0 0.0
  %1313 = vmatpush1.msra.mxu0 0.0
  %1314 = vmatprep.subr.mxu0 0.0
  %1315 = vmatpush1.msra.mxu0 0.0
  %1316 = vmatprep.subr.mxu0 0.0
  %1317 = vmatpush1.msra.mxu0 0.0
  %1318 = vmatprep.subr.mxu0 0.0
  %1319 = vmatpush1.msra.mxu0 0.0
  %1320 = vmatprep.subr.mxu0 0.0
  %1321 = vmatpush1.msra.mxu0 0.0
  %1322 = vmatprep.subr.mxu0 0.0
  %1323 = vmatpush1.msra.mxu0 0.0
  %1324 = vmatprep.subr.mxu0 0.0
  %1325 = vmatpush1.msra.mxu0 0.0
  %1326 = vmatprep.subr.mxu0 0.0
  %1327 = vmatpush1.msra.mxu0 0.0
  %1328 = vmatprep.subr.mxu0 0.0
  %1329 = vmatpush1.msra.mxu0 0.0
  %1330 = vmatprep.subr.mxu0 0.0
  %1331 = vmatpush1.msra.mxu0 0.0
  %1332 = vmatprep.subr.mxu0 0.0
  %1333 = vmatpush1.msra.mxu0 0.0
  %1334 = vmatprep.subr.mxu0 0.0
  %1335 = vmatpush1.msra.mxu0 0.0
  %1336 = vmatprep.subr.mxu0 0.0
  %1337 = vmatpush1.msra.mxu0 0.0
  %1338 = vmatprep.subr.mxu0 0.0
  %1339 = vmatpush1.msra.mxu0 0.0
  %1340 = vmatprep.subr.mxu0 0.0
  %1341 = vmatpush1.msra.mxu0 0.0
  %1342 = vmatprep.subr.mxu0 0.0
  %1343 = vmatpush1.msra.mxu0 0.0
  %1344 = vmatprep.subr.mxu0 0.0
  %1345 = vmatpush1.msra.mxu0 0.0
  %1346 = vmatprep.subr.mxu0 0.0
  %1347 = vmatpush1.msra.mxu0 0.0
  %1348 = vmatprep.subr.mxu0 0.0
  %1349 = vmatpush1.msra.mxu0 0.0
  %1350 = vmatprep.subr.mxu0 0.0
  %1351 = vmatpush1.msra.mxu0 0.0
  %1352 = vmatprep.subr.mxu0 0.0
  %1353 = vmatpush1.msra.mxu0 0.0
  %1354 = vmatprep.subr.mxu0 0.0
  %1355 = vmatpush1.msra.mxu0 0.0
  %1356 = vmatprep.subr.mxu0 0.0
  %1357 = vmatpush1.msra.mxu0 0.0
  %1358 = vmatprep.mubr.f32.mxu0 0.0
  %1359 = vmatmul.mubr.f32.gmra.mrb[0].mxu0 %v1150
  %v1360 = vpop.f32.mrb[0].mxu0
  %v1361 = vadd.f32 0.0, %v1360
  %v1362 = vpop.f32.mrb[0].mxu0
  %v1363 = vadd.f32 0.0, %v1362
  %1364 = vdwg.mxu0
  %1365 = vmatprep.subr.mxu0 %v1123
  %1366 = vmatpush1.msra.mxu0 %v1122
  %1367 = vmatprep.subr.mxu0 %v1131
  %1368 = vmatpush1.msra.mxu0 %v1130
  %1369 = vmatprep.subr.mxu0 %v1139
  %1370 = vmatpush1.msra.mxu0 %v1138
  %1371 = vmatprep.subr.mxu0 %v1147
  %1372 = vmatpush1.msra.mxu0 %v1146
  %1373 = vmatprep.subr.mxu0 0.0
  %1374 = vmatpush1.msra.mxu0 0.0
  %1375 = vmatprep.subr.mxu0 0.0
  %1376 = vmatpush1.msra.mxu0 0.0
  %1377 = vmatprep.subr.mxu0 0.0
  %1378 = vmatpush1.msra.mxu0 0.0
  %1379 = vmatprep.subr.mxu0 0.0
  %1380 = vmatpush1.msra.mxu0 0.0
  %1381 = vmatprep.subr.mxu0 0.0
  %1382 = vmatpush1.msra.mxu0 0.0
  %1383 = vmatprep.subr.mxu0 0.0
  %1384 = vmatpush1.msra.mxu0 0.0
  %1385 = vmatprep.subr.mxu0 0.0
  %1386 = vmatpush1.msra.mxu0 0.0
  %1387 = vmatprep.subr.mxu0 0.0
  %1388 = vmatpush1.msra.mxu0 0.0
  %1389 = vmatprep.subr.mxu0 0.0
  %1390 = vmatpush1.msra.mxu0 0.0
  %1391 = vmatprep.subr.mxu0 0.0
  %1392 = vmatpush1.msra.mxu0 0.0
  %1393 = vmatprep.subr.mxu0 0.0
  %1394 = vmatpush1.msra.mxu0 0.0
  %1395 = vmatprep.subr.mxu0 0.0
  %1396 = vmatpush1.msra.mxu0 0.0
  %1397 = vmatprep.subr.mxu0 0.0
  %1398 = vmatpush1.msra.mxu0 0.0
  %1399 = vmatprep.subr.mxu0 0.0
  %1400 = vmatpush1.msra.mxu0 0.0
  %1401 = vmatprep.subr.mxu0 0.0
  %1402 = vmatpush1.msra.mxu0 0.0
  %1403 = vmatprep.subr.mxu0 0.0
  %1404 = vmatpush1.msra.mxu0 0.0
  %1405 = vmatprep.subr.mxu0 0.0
  %1406 = vmatpush1.msra.mxu0 0.0
  %1407 = vmatprep.subr.mxu0 0.0
  %1408 = vmatpush1.msra.mxu0 0.0
  %1409 = vmatprep.subr.mxu0 0.0
  %1410 = vmatpush1.msra.mxu0 0.0
  %1411 = vmatprep.subr.mxu0 0.0
  %1412 = vmatpush1.msra.mxu0 0.0
  %1413 = vmatprep.subr.mxu0 0.0
  %1414 = vmatpush1.msra.mxu0 0.0
  %1415 = vmatprep.subr.mxu0 0.0
  %1416 = vmatpush1.msra.mxu0 0.0
  %1417 = vmatprep.subr.mxu0 0.0
  %1418 = vmatpush1.msra.mxu0 0.0
  %1419 = vmatprep.subr.mxu0 0.0
  %1420 = vmatpush1.msra.mxu0 0.0
  %1421 = vmatprep.subr.mxu0 0.0
  %1422 = vmatpush1.msra.mxu0 0.0
  %1423 = vmatprep.subr.mxu0 0.0
  %1424 = vmatpush1.msra.mxu0 0.0
  %1425 = vmatprep.subr.mxu0 0.0
  %1426 = vmatpush1.msra.mxu0 0.0
  %1427 = vmatprep.subr.mxu0 0.0
  %1428 = vmatpush1.msra.mxu0 0.0
  %1429 = vmatprep.mubr.f32.mxu0 0.0
  %1430 = vmatmul.mubr.f32.gmra.mrb[0].mxu0 %v1150
  %v1431 = vpop.f32.mrb[0].mxu0
  %v1432 = vadd.f32 0.0, %v1431
  %v1433 = vpop.f32.mrb[0].mxu0
  %v1434 = vadd.f32 0.0, %v1433
  %1435 = vdwg.mxu0
  %v1436 = vmul.f32 %v1219, %v624
  %v1437 = vmul.f32 %v1221, %v625
  %v1438 = vmul.f32 %v1290, %v626
  %v1439 = vmul.f32 %v1292, %v627
  %v1440 = vmul.f32 %v1361, %v628
  %v1441 = vmul.f32 %v1363, %v629
  %v1442 = vmul.f32 %v1432, %v630
  %v1443 = vmul.f32 %v1434, %v631
  %v1444 = vadd.f32 %v1436, %v1438
  %v1445 = vadd.f32 %v1437, %v1439
  %v1446 = vadd.f32 %v1444, %v1440
  %v1447 = vadd.f32 %v1445, %v1441
  %v1448 = vadd.f32 %v1446, %v1442
  %v1449 = vadd.f32 %v1447, %v1443
  %v1450 = vmax.f32 %v1448, 0.0
  %v1451 = vmax.f32 %v1449, 0.0
  %v1452 = vpack.c.bf16 %v1450, %v1450
  %v1453 = vpack.c.bf16 %v1451, %v1451
  %v1454 = vld [vmem:[%s5] sm:$0xf]
  %v1455 = vld [vmem:[%s5 + $0x4] sm:$0xf]
  %v1456 = vld [vmem:[%s5 + $0x8] sm:$0xf]
  %v1457 = vld [vmem:[%s5 + $0xc] sm:$0xf]
  %v1458 = vld [vmem:[%s5 + $0x10] sm:$0xf]
  %v1459 = vld [vmem:[%s5 + $0x14] sm:$0xf]
  %v1460 = vld [vmem:[%s5 + $0x18] sm:$0xf]
  %v1461 = vld [vmem:[%s5 + $0x1c] sm:$0xf]
  %v1462 = vld [vmem:[%s5 + $0x20] sm:$0xf]
  %v1463 = vld [vmem:[%s5 + $0x24] sm:$0xf]
  %v1464 = vld [vmem:[%s5 + $0x28] sm:$0xf]
  %v1465 = vld [vmem:[%s5 + $0x2c] sm:$0xf]
  %v1466 = vld [vmem:[%s5 + $0x30] sm:$0xf]
  %v1467 = vld [vmem:[%s5 + $0x34] sm:$0xf]
  %v1468 = vld [vmem:[%s5 + $0x38] sm:$0xf]
  %v1469 = vld [vmem:[%s5 + $0x3c] sm:$0xf]
  %v1470 = vld [vmem:[%s5 + $0x40] sm:$0xf]
  %v1471 = vld [vmem:[%s5 + $0x44] sm:$0xf]
  %v1472 = vld [vmem:[%s5 + $0x48] sm:$0xf]
  %v1473 = vld [vmem:[%s5 + $0x4c] sm:$0xf]
  %v1474 = vld [vmem:[%s5 + $0x50] sm:$0xf]
  %v1475 = vld [vmem:[%s5 + $0x54] sm:$0xf]
  %v1476 = vld [vmem:[%s5 + $0x58] sm:$0xf]
  %v1477 = vld [vmem:[%s5 + $0x5c] sm:$0xf]
  %v1478 = vld [vmem:[%s5 + $0x60] sm:$0xf]
  %v1479 = vld [vmem:[%s5 + $0x64] sm:$0xf]
  %v1480 = vld [vmem:[%s5 + $0x68] sm:$0xf]
  %v1481 = vld [vmem:[%s5 + $0x6c] sm:$0xf]
  %v1482 = vld [vmem:[%s5 + $0x70] sm:$0xf]
  %v1483 = vld [vmem:[%s5 + $0x74] sm:$0xf]
  %v1484 = vld [vmem:[%s5 + $0x78] sm:$0xf]
  %v1485 = vld [vmem:[%s5 + $0x7c] sm:$0xf]
  %v1486 = vld [vmem:[%s6] sm:$0x1]
  %v1488 = vlaneseq
  %v1489 = vshrl.u32 %v1488, 7
  %v1490 = vsub.s32 0, %v1489
  %v1491 = vrot.slane %v1486, %v1490
  %v1525 = vunpack.c.l.b16 %v1454
  %v1526 = vunpack.c.l.b16 %v1455
  %v1527 = vunpack.c.l.b16 %v1456
  %v1528 = vunpack.c.l.b16 %v1457
  %v1529 = vunpack.c.l.b16 %v1458
  %v1530 = vunpack.c.l.b16 %v1459
  %v1531 = vunpack.c.l.b16 %v1460
  %v1532 = vunpack.c.l.b16 %v1461
  %v1533 = vunpack.c.l.b16 %v1462
  %v1534 = vunpack.c.l.b16 %v1463
  %v1535 = vunpack.c.l.b16 %v1464
  %v1536 = vunpack.c.l.b16 %v1465
  %v1537 = vunpack.c.l.b16 %v1466
  %v1538 = vunpack.c.l.b16 %v1467
  %v1539 = vunpack.c.l.b16 %v1468
  %v1540 = vunpack.c.l.b16 %v1469
  %v1541 = vunpack.c.l.b16 %v1470
  %v1542 = vunpack.c.l.b16 %v1471
  %v1543 = vunpack.c.l.b16 %v1472
  %v1544 = vunpack.c.l.b16 %v1473
  %v1545 = vunpack.c.l.b16 %v1474
  %v1546 = vunpack.c.l.b16 %v1475
  %v1547 = vunpack.c.l.b16 %v1476
  %v1548 = vunpack.c.l.b16 %v1477
  %v1549 = vunpack.c.l.b16 %v1478
  %v1550 = vunpack.c.l.b16 %v1479
  %v1551 = vunpack.c.l.b16 %v1480
  %v1552 = vunpack.c.l.b16 %v1481
  %v1553 = vunpack.c.l.b16 %v1482
  %v1554 = vunpack.c.l.b16 %v1483
  %v1555 = vunpack.c.l.b16 %v1484
  %v1556 = vunpack.c.l.b16 %v1485
  %v1557 = vpack.c.b16 %v1526, %v1525
  %v1558 = vpack.c.b16 %v1528, %v1527
  %v1559 = vpack.c.b16 %v1530, %v1529
  %v1560 = vpack.c.b16 %v1532, %v1531
  %v1561 = vpack.c.b16 %v1534, %v1533
  %v1562 = vpack.c.b16 %v1536, %v1535
  %v1563 = vpack.c.b16 %v1538, %v1537
  %v1564 = vpack.c.b16 %v1540, %v1539
  %v1565 = vpack.c.b16 %v1542, %v1541
  %v1566 = vpack.c.b16 %v1544, %v1543
  %v1567 = vpack.c.b16 %v1546, %v1545
  %v1568 = vpack.c.b16 %v1548, %v1547
  %v1569 = vpack.c.b16 %v1550, %v1549
  %v1570 = vpack.c.b16 %v1552, %v1551
  %v1571 = vpack.c.b16 %v1554, %v1553
  %v1572 = vpack.c.b16 %v1556, %v1555
  %1589 = vmatprep.subr.bf16.mxu0 0
  %1590 = vmatpush1.bf16.msra.mxu0 %v1557
  %1591 = vmatprep.subr.bf16.mxu0 0
  %1592 = vmatpush1.bf16.msra.mxu0 %v1558
  %1593 = vmatprep.subr.bf16.mxu0 0
  %1594 = vmatpush1.bf16.msra.mxu0 %v1559
  %1595 = vmatprep.subr.bf16.mxu0 0
  %1596 = vmatpush1.bf16.msra.mxu0 %v1560
  %1597 = vmatprep.subr.bf16.mxu0 0
  %1598 = vmatpush1.bf16.msra.mxu0 %v1561
  %1599 = vmatprep.subr.bf16.mxu0 0
  %1600 = vmatpush1.bf16.msra.mxu0 %v1562
  %1601 = vmatprep.subr.bf16.mxu0 0
  %1602 = vmatpush1.bf16.msra.mxu0 %v1563
  %1603 = vmatprep.subr.bf16.mxu0 0
  %1604 = vmatpush1.bf16.msra.mxu0 %v1564
  %1605 = vmatprep.subr.bf16.mxu0 0
  %1606 = vmatpush1.bf16.msra.mxu0 %v1565
  %1607 = vmatprep.subr.bf16.mxu0 0
  %1608 = vmatpush1.bf16.msra.mxu0 %v1566
  %1609 = vmatprep.subr.bf16.mxu0 0
  %1610 = vmatpush1.bf16.msra.mxu0 %v1567
  %1611 = vmatprep.subr.bf16.mxu0 0
  %1612 = vmatpush1.bf16.msra.mxu0 %v1568
  %1613 = vmatprep.subr.bf16.mxu0 0
  %1614 = vmatpush1.bf16.msra.mxu0 %v1569
  %1615 = vmatprep.subr.bf16.mxu0 0
  %1616 = vmatpush1.bf16.msra.mxu0 %v1570
  %1617 = vmatprep.subr.bf16.mxu0 0
  %1618 = vmatpush1.bf16.msra.mxu0 %v1571
  %1619 = vmatprep.subr.bf16.mxu0 0
  %1620 = vmatpush1.bf16.msra.mxu0 %v1572
  %1621 = vmatprep.mubr.bf16.mxu0 %v1453
  %1622 = vmatmul.mubr.bf16.gmra.mrb[0].mxu0 %v1452
  %v1623 = vpop.f32.mrb[0].mxu0
  %v1624 = vadd.f32 %v1491, %v1623
  %v1625 = vpop.f32.mrb[0].mxu0
  %v1626 = vpop.f32.mrb[0].mxu0
  %v1627 = vpop.f32.mrb[0].mxu0
  %1628 = vdwg.mxu0
  %v1629 = vmax.f32 %v1624, 0.0
  %1630 = vst [vmem:[%s8] sm:$0xff] %v1629
  %1631 = vst.msk [vmem:[%s9] sm:$0xff] %vm1148, %v1115
  // Predicated region
  $region34: #{dhg_layer_forward.1} parent=0 // pred_check
    _
  $region35: #{dhg_layer_forward.1} parent=0 // pred_check_branch
    %1633 = sbr.rel (0) target = $region37
  $region36: #{dhg_layer_forward.1} parent=0 // pred_region
    _
  $region37: #{dhg_layer_forward.1} parent=0 // pred_fallthru
    _
  // Predicated region
  $region38: #{dhg_layer_forward.1} parent=0 // pred_check
    _
  $region39: #{dhg_layer_forward.1} parent=0 // pred_check_branch
    %1635 = sbr.rel (0) target = $region41
  $region40: #{dhg_layer_forward.1} parent=0 // pred_region
    _
  $region41: #{dhg_layer_forward.1} parent=0 // pred_fallthru
    _
  // Predicated region
  $region42: #{dhg_layer_forward.1} parent=0 // pred_check
    _
  $region43: #{dhg_layer_forward.1} parent=0 // pred_check_branch
    %1637 = sbr.rel (0) target = $region45
  $region44: #{dhg_layer_forward.1} parent=0 // pred_region
    _
  $region45: #{dhg_layer_forward.1} parent=0 // pred_fallthru
    _
  // Predicated region
  $region46: #{dhg_layer_forward.1} parent=0 // pred_check
    _
  $region47: #{dhg_layer_forward.1} parent=0 // pred_check_branch
    %1639 = sbr.rel (0) target = $region49
  $region48: #{dhg_layer_forward.1} parent=0 // pred_region
    _
  $region49: #{dhg_layer_forward.1} parent=0 // pred_fallthru
    _

</llo_original>
